<compile_context>
chip_gen: v7x
topology: tpu7x:2x2x1
jax: 0.10.0
libtpu: 0.0.40
codegen_flags: <defaults>
</compile_context>

<pallas_src>
import functools

import jax
import jax.numpy as jnp
import numpy as np
from jax.experimental import pallas as pl
from jax.experimental.pallas import tpu as pltpu


def _dsh_loss_kernel(u_ref, y_ref, ut_ref, yt_ref, out_ref, acc_ref, usq_ref,
                     *, m):
    """Grid = (n_par, inner): axis 0 'parallel' (megacore split of the
    num_train sweep), axis 1 'arbitrary' (accumulation).

    u_ref  : (B, bit)        f32   resident
    y_ref  : (B, n_class)    bf16  resident
    ut_ref : (bit, TN)       f32   streamed, lane-dense
    yt_ref : (n_class, TN)   bf16  streamed, lane-dense
    out_ref: (1, 8, 128)     f32   per-parallel-chunk partial sum
    acc_ref: (B, TN)         f32   lane-dense running loss accumulator
    usq_ref: (B, 1)          f32   hoisted ||u||^2 per row
    """
    k = pl.program_id(1)

    @pl.when(k == 0)
    def _():
        acc_ref[...] = jnp.zeros_like(acc_ref)
        u0 = u_ref[...]
        usq_ref[...] = jnp.sum(u0 * u0, axis=1, keepdims=True)

    u = u_ref[...]                       # (B, bit)       f32
    y = y_ref[...]                       # (B, n_class)   bf16
    ut = ut_ref[...]                     # (bit, TN)      f32
    yt = yt_ref[...]                     # (n_class, TN)  bf16

    # dist[i, j] = ||u_i||^2 + ||U_j||^2 - 2 * <u_i, U_j>  (cross term on MXU)
    cross = jnp.dot(u, ut, preferred_element_type=jnp.float32)   # (B, TN)
    u_sq = usq_ref[...]                                          # (B, 1)
    U_sq = jnp.sum(ut * ut, axis=0, keepdims=True)               # (1, TN)
    dist = u_sq + U_sq - 2.0 * cross                             # (B, TN)

    # Similarity indicator: 1.0 where the pair shares NO label.  The label dot
    # product is integer-valued (0/1 one-hot, exact in bf16), so "< 0.5" is
    # identical to "== 0" but robust to float equality.
    yY = jnp.dot(y, yt, preferred_element_type=jnp.float32)      # (B, TN) MXU
    s = (yY < 0.5).astype(jnp.float32)

    # DSH hinge loss, accumulated lane-dense; cross-lane reduce deferred.
    loss_tile = (1.0 - s) * 0.5 * dist + s * 0.5 * jnp.maximum(m - dist, 0.0)
    acc_ref[...] += loss_tile

    @pl.when(k == pl.num_programs(1) - 1)
    def _():
        partial = jnp.sum(acc_ref[...])
        out_ref[...] = jnp.full(out_ref.shape, partial, dtype=out_ref.dtype)


def _pick_tiling(num_train, tile_cap):
    """Choose (n_par, tile_n): n_par in {2, 1}; tile_n a multiple of 128 that
    divides num_train // n_par and is as close to tile_cap as possible."""
    for n_par in (2, 1):
        if num_train % n_par:
            continue
        per_core = num_train // n_par
        if per_core % 128:
            continue
        t = min(tile_cap, per_core)
        t -= t % 128
        while t >= 128 and per_core % t:
            t -= 128
        if t >= 128:
            return n_par, t
    raise ValueError("num_train must be a multiple of 128")


def dsh_loss(u, y, ind, U, Y, *, m, alpha, tile_n=4096):
    """Functional equivalent of DSHLoss.forward.

    Returns (loss_scalar, updated_U, updated_Y).
    """
    u = u.astype(jnp.float32)
    y = y.astype(jnp.float32)

    # Buffer updates (self.U[ind] = u; self.Y[ind] = y) -- plain-JAX glue.
    U = U.at[ind, :].set(u)
    Y = Y.at[ind, :].set(y)

    batch, bit = u.shape
    num_train = U.shape[0]
    n_class = y.shape[1]

    # Tile the num_train axis (the lane axis of the transposed operands).
    # Outer 'parallel' split of the sweep: both v7x TensorCores get half of
    # num_train; on v5e/v6e it is just two sequential chunks (negligible cost).
    n_par, tile_n = _pick_tiling(num_train, tile_n)
    inner = num_train // (n_par * tile_n)

    # Lane-dense transposed operands.  bf16 is exact for 0/1 labels, halves the
    # Y stream and makes the label matmul MXU-native; U stays f32 so the
    # distance matches the reference to f32 accuracy.
    ut = U.T                              # (bit, num_train)      f32
    yt = Y.T.astype(jnp.bfloat16)         # (n_class, num_train)  bf16
    y_b = y.astype(jnp.bfloat16)          # (batch, n_class)      bf16

    kernel = functools.partial(_dsh_loss_kernel, m=float(m))

    partials = pl.pallas_call(
        kernel,
        out_shape=jax.ShapeDtypeStruct((n_par, 8, 128), jnp.float32),
        grid=(n_par, inner),
        in_specs=[
            pl.BlockSpec((batch, bit), lambda p, k: (0, 0)),          # u (resident)
            pl.BlockSpec((batch, n_class), lambda p, k: (0, 0)),      # y (resident)
            pl.BlockSpec((bit, tile_n),
                         lambda p, k: (0, p * inner + k)),            # U^T tile
            pl.BlockSpec((n_class, tile_n),
                         lambda p, k: (0, p * inner + k)),            # Y^T tile
        ],
        out_specs=pl.BlockSpec((1, 8, 128), lambda p, k: (p, 0, 0)),  # partials
        scratch_shapes=[
            pltpu.VMEM((batch, tile_n), jnp.float32),   # lane-dense loss acc
            pltpu.VMEM((batch, 1), jnp.float32),        # hoisted ||u||^2
        ],
        compiler_params=pltpu.CompilerParams(
            dimension_semantics=("parallel", "arbitrary")),
    )(u, y_b, ut, yt)

    pair_sum = jnp.sum(partials[:, 0, 0])
    loss1 = pair_sum / jnp.float32(batch * num_train)
    # Quantization regularizer alpha * mean(|1 - |u||) -- tiny, plain JAX.
    loss2 = alpha * jnp.mean(jnp.abs(1.0 - jnp.abs(u)))
    return loss1 + loss2, U, Y


def dsh_loss_ref(u, y, ind, U, Y, *, m, alpha):
    """Plain-JAX reference, line-for-line with the PyTorch module."""
    u = u.astype(jnp.float32)
    y = y.astype(jnp.float32)
    U = U.at[ind, :].set(u)
    Y = Y.at[ind, :].set(y)
    dist = jnp.sum((u[:, None, :] - U[None, :, :]) ** 2, axis=2)
    s = (y @ Y.T == 0).astype(jnp.float32)
    loss = (1 - s) / 2 * dist + s / 2 * jnp.clip(m - dist, 0.0, None)
    loss1 = jnp.mean(loss)
    loss2 = alpha * jnp.mean(jnp.abs(1 - jnp.abs(u)))
    return loss1 + loss2


if __name__ == "__main__":
    # Small, deterministic problem consistent with the module:
    #   config = {num_train: 4096, n_class: 4, alpha: 0.1}, bit = 16
    batch, bit, n_class, num_train = 8, 16, 4, 4096
    m = 2.0 * bit
    alpha = 0.1

    key = jax.random.PRNGKey(0)
    k_u, k_lbl, k_ind = jax.random.split(key, 3)

    u = jnp.tanh(jax.random.normal(k_u, (batch, bit), dtype=jnp.float32))
    labels = jax.random.randint(k_lbl, (batch,), 0, n_class)
    y = jax.nn.one_hot(labels, n_class, dtype=jnp.float32)
    ind = jax.random.permutation(k_ind, num_train)[:batch]

    # Module __init__ buffers (torch.zeros(num_train, bit/n_class)).
    U0 = jnp.zeros((num_train, bit), dtype=jnp.float32)
    Y0 = jnp.zeros((num_train, n_class), dtype=jnp.float32)

    loss, U1, Y1 = jax.jit(
        functools.partial(dsh_loss, m=m, alpha=alpha))(u, y, ind, U0, Y0)
    jax.block_until_ready(loss)

    loss_ref = dsh_loss_ref(u, y, ind, U0, Y0, m=m, alpha=alpha)
    np.testing.assert_allclose(np.asarray(loss), np.asarray(loss_ref),
                               rtol=1e-4, atol=1e-5)

    print("KERNEL_OK")
</pallas_src>

<mosaic_0001>
module attributes {stable_mosaic.version = 11 : i64} {
  func.func @_dsh_loss_kernel(%arg0: i32, %arg1: i32, %arg2: memref<8x16xf32, #tpu.memory_space<vmem>>, %arg3: memref<8x4xbf16, #tpu.memory_space<vmem>>, %arg4: memref<16x2048xf32, #tpu.memory_space<vmem>>, %arg5: memref<4x2048xbf16, #tpu.memory_space<vmem>>, %arg6: memref<1x8x128xf32, #tpu.memory_space<vmem>>, %arg7: memref<8x2048xf32, #tpu.memory_space<vmem>>, %arg8: memref<8x1xf32, #tpu.memory_space<vmem>>) attributes {dimension_semantics = [#tpu.dimension_semantics<parallel>, #tpu.dimension_semantics<arbitrary>], iteration_bounds = array<i64: 2, 1>, scalar_prefetch = 0 : i64, scratch_operands = 2 : i64, tpu.core_type = #tpu.core_type<tc>, window_params = [{pipeline_mode = #tpu.pipeline_mode<synchronous>, transform_indices = @transform_0, window_bounds = array<i64: 8, 16>}, {pipeline_mode = #tpu.pipeline_mode<synchronous>, transform_indices = @transform_1, window_bounds = array<i64: 8, 4>}, {transform_indices = @transform_2, window_bounds = array<i64: 16, 2048>}, {transform_indices = @transform_3, window_bounds = array<i64: 4, 2048>}, {transform_indices = @transform_4, window_bounds = array<i64: 1, 8, 128>}]} {
    %c0_i32 = arith.constant 0 : i32
    %0 = arith.cmpi eq, %arg1, %c0_i32 : i32
    %1 = arith.extui %0 : i1 to i32
    %c0_i32_0 = arith.constant 0 : i32
    %2 = arith.cmpi ne, %1, %c0_i32_0 : i32
    scf.if %2 {
      %cst_25 = arith.constant 0.000000e+00 : f32
      %42 = vector.broadcast %cst_25 : f32 to vector<8x2048xf32>
      %c0_26 = arith.constant 0 : index
      %c0_27 = arith.constant 0 : index
      %43 = vector.load %arg7[%c0_26, %c0_27] : memref<8x2048xf32, #tpu.memory_space<vmem>>, vector<8x2048xf32>
      tpu.vector_store %arg7[%c0_26, %c0_27], %42 {strides = array<i32>} : memref<8x2048xf32, #tpu.memory_space<vmem>>, vector<8x2048xf32>,
      %c0_28 = arith.constant 0 : index
      %c0_29 = arith.constant 0 : index
      %44 = vector.load %arg2[%c0_28, %c0_29] : memref<8x16xf32, #tpu.memory_space<vmem>>, vector<8x16xf32>
      %45 = arith.mulf %44, %44 : vector<8x16xf32>
      %cst_30 = arith.constant dense<0.000000e+00> : vector<8xf32>
      %46 = vector.multi_reduction <add>, %45, %cst_30 [1] : vector<8x16xf32> to vector<8xf32>
      %47 = vector.shape_cast %46 : vector<8xf32> to vector<8x1xf32>
      %c0_31 = arith.constant 0 : index
      %c0_32 = arith.constant 0 : index
      %48 = vector.load %arg8[%c0_31, %c0_32] : memref<8x1xf32, #tpu.memory_space<vmem>>, vector<8x1xf32>
      tpu.vector_store %arg8[%c0_31, %c0_32], %47 {strides = array<i32>} : memref<8x1xf32, #tpu.memory_space<vmem>>, vector<8x1xf32>,
    } else {
    }
    %c0 = arith.constant 0 : index
    %c0_1 = arith.constant 0 : index
    %3 = vector.load %arg2[%c0, %c0_1] : memref<8x16xf32, #tpu.memory_space<vmem>>, vector<8x16xf32>
    %c0_2 = arith.constant 0 : index
    %c0_3 = arith.constant 0 : index
    %4 = vector.load %arg3[%c0_2, %c0_3] : memref<8x4xbf16, #tpu.memory_space<vmem>>, vector<8x4xbf16>
    %c0_4 = arith.constant 0 : index
    %c0_5 = arith.constant 0 : index
    %5 = vector.load %arg4[%c0_4, %c0_5] : memref<16x2048xf32, #tpu.memory_space<vmem>>, vector<16x2048xf32>
    %c0_6 = arith.constant 0 : index
    %c0_7 = arith.constant 0 : index
    %6 = vector.load %arg5[%c0_6, %c0_7] : memref<4x2048xbf16, #tpu.memory_space<vmem>>, vector<4x2048xbf16>
    %cst = arith.constant dense<0.000000e+00> : vector<8x2048xf32>
    %7 = tpu.matmul %3, %5, %cst {dimension_numbers = #tpu.dot_dimension_numbers<[1], [0], [0], [1], [0, 0, 1, 1], [], []>} : vector<8x16xf32>, vector<16x2048xf32>, vector<8x2048xf32> -> vector<8x2048xf32>
    %c0_8 = arith.constant 0 : index
    %c0_9 = arith.constant 0 : index
    %8 = vector.load %arg8[%c0_8, %c0_9] : memref<8x1xf32, #tpu.memory_space<vmem>>, vector<8x1xf32>
    %9 = arith.mulf %5, %5 : vector<16x2048xf32>
    %cst_10 = arith.constant dense<0.000000e+00> : vector<2048xf32>
    %10 = vector.multi_reduction <add>, %9, %cst_10 [0] : vector<16x2048xf32> to vector<2048xf32>
    %11 = vector.shape_cast %10 : vector<2048xf32> to vector<1x2048xf32>
    %12 = vector.broadcast %8 : vector<8x1xf32> to vector<8x2048xf32>
    %13 = vector.broadcast %11 : vector<1x2048xf32> to vector<8x2048xf32>
    %14 = arith.addf %12, %13 : vector<8x2048xf32>
    %cst_11 = arith.constant 2.000000e+00 : f32
    %15 = vector.broadcast %cst_11 : f32 to vector<8x2048xf32>
    %16 = arith.mulf %15, %7 : vector<8x2048xf32>
    %17 = arith.subf %14, %16 : vector<8x2048xf32>
    %cst_12 = arith.constant dense<0.000000e+00> : vector<8x2048xf32>
    %18 = tpu.matmul %4, %6, %cst_12 {dimension_numbers = #tpu.dot_dimension_numbers<[1], [0], [0], [1], [0, 0, 1, 1], [], []>} : vector<8x4xbf16>, vector<4x2048xbf16>, vector<8x2048xf32> -> vector<8x2048xf32>
    %cst_13 = arith.constant 5.000000e-01 : f32
    %19 = vector.broadcast %cst_13 : f32 to vector<8x2048xf32>
    %20 = arith.cmpf olt, %18, %19 : vector<8x2048xf32>
    %21 = arith.extui %20 : vector<8x2048xi1> to vector<8x2048xi32>
    %22 = arith.sitofp %21 : vector<8x2048xi32> to vector<8x2048xf32>
    %cst_14 = arith.constant 1.000000e+00 : f32
    %23 = vector.broadcast %cst_14 : f32 to vector<8x2048xf32>
    %24 = arith.subf %23, %22 : vector<8x2048xf32>
    %cst_15 = arith.constant 5.000000e-01 : f32
    %25 = vector.broadcast %cst_15 : f32 to vector<8x2048xf32>
    %26 = arith.mulf %24, %25 : vector<8x2048xf32>
    %27 = arith.mulf %26, %17 : vector<8x2048xf32>
    %cst_16 = arith.constant 5.000000e-01 : f32
    %28 = vector.broadcast %cst_16 : f32 to vector<8x2048xf32>
    %29 = arith.mulf %22, %28 : vector<8x2048xf32>
    %cst_17 = arith.constant 3.200000e+01 : f32
    %30 = vector.broadcast %cst_17 : f32 to vector<8x2048xf32>
    %31 = arith.subf %30, %17 : vector<8x2048xf32>
    %cst_18 = arith.constant 0.000000e+00 : f32
    %32 = vector.broadcast %cst_18 : f32 to vector<8x2048xf32>
    %33 = arith.maximumf %31, %32 : vector<8x2048xf32>
    %34 = arith.mulf %29, %33 : vector<8x2048xf32>
    %35 = arith.addf %27, %34 : vector<8x2048xf32>
    %c0_19 = arith.constant 0 : index
    %c0_20 = arith.constant 0 : index
    %36 = vector.load %arg7[%c0_19, %c0_20] : memref<8x2048xf32, #tpu.memory_space<vmem>>, vector<8x2048xf32>
    %37 = arith.addf %36, %35 : vector<8x2048xf32>
    %c0_21 = arith.constant 0 : index
    %c0_22 = arith.constant 0 : index
    %38 = vector.load %arg7[%c0_21, %c0_22] : memref<8x2048xf32, #tpu.memory_space<vmem>>, vector<8x2048xf32>
    tpu.vector_store %arg7[%c0_21, %c0_22], %37 {strides = array<i32>} : memref<8x2048xf32, #tpu.memory_space<vmem>>, vector<8x2048xf32>,
    %c0_i32_23 = arith.constant 0 : i32
    %39 = arith.cmpi eq, %arg1, %c0_i32_23 : i32
    %40 = arith.extui %39 : i1 to i32
    %c0_i32_24 = arith.constant 0 : i32
    %41 = arith.cmpi ne, %40, %c0_i32_24 : i32
    scf.if %41 {
      %c0_25 = arith.constant 0 : index
      %c0_26 = arith.constant 0 : index
      %42 = vector.load %arg7[%c0_25, %c0_26] : memref<8x2048xf32, #tpu.memory_space<vmem>>, vector<8x2048xf32>
      %43 = vector.shape_cast %42 : vector<8x2048xf32> to vector<1x8x2048xf32>
      %cst_27 = arith.constant dense<0.000000e+00> : vector<1xf32>
      %44 = vector.multi_reduction <add>, %43, %cst_27 [1, 2] : vector<1x8x2048xf32> to vector<1xf32>
      %45 = vector.shape_cast %44 : vector<1xf32> to vector<1x1x1xf32>
      %46 = vector.extract %45[0, 0, 0] : f32 from vector<1x1x1xf32>
      %47 = vector.broadcast %46 : f32 to vector<1x8x128xf32>
      %c0_28 = arith.constant 0 : index
      %c0_29 = arith.constant 0 : index
      %c0_30 = arith.constant 0 : index
      %48 = vector.load %arg6[%c0_28, %c0_29, %c0_30] : memref<1x8x128xf32, #tpu.memory_space<vmem>>, vector<1x8x128xf32>
      tpu.vector_store %arg6[%c0_28, %c0_29, %c0_30], %47 {strides = array<i32>} : memref<1x8x128xf32, #tpu.memory_space<vmem>>, vector<1x8x128xf32>,
    } else {
    }
    return
  }
  func.func @transform_0(%arg0: i32, %arg1: i32) -> (i32, i32) {
    %c0_i32 = arith.constant 0 : i32
    %c0_i32_0 = arith.constant 0 : i32
    %c0_i32_1 = arith.constant 0 : i32
    return %c0_i32, %c0_i32_0 : i32, i32
  }
  func.func @transform_1(%arg0: i32, %arg1: i32) -> (i32, i32) {
    %c0_i32 = arith.constant 0 : i32
    %c0_i32_0 = arith.constant 0 : i32
    %c0_i32_1 = arith.constant 0 : i32
    return %c0_i32, %c0_i32_0 : i32, i32
  }
  func.func @transform_2(%arg0: i32, %arg1: i32) -> (i32, i32) {
    %c1_i32 = arith.constant 1 : i32
    %0 = arith.muli %arg0, %c1_i32 : i32
    %1 = arith.addi %0, %arg1 : i32
    %c0_i32 = arith.constant 0 : i32
    %c0_i32_0 = arith.constant 0 : i32
    return %c0_i32, %1 : i32, i32
  }
  func.func @transform_3(%arg0: i32, %arg1: i32) -> (i32, i32) {
    %c1_i32 = arith.constant 1 : i32
    %0 = arith.muli %arg0, %c1_i32 : i32
    %1 = arith.addi %0, %arg1 : i32
    %c0_i32 = arith.constant 0 : i32
    %c0_i32_0 = arith.constant 0 : i32
    return %c0_i32, %1 : i32, i32
  }
  func.func @transform_4(%arg0: i32, %arg1: i32) -> (i32, i32, i32) {
    %c0_i32 = arith.constant 0 : i32
    %c0_i32_0 = arith.constant 0 : i32
    %c0_i32_1 = arith.constant 0 : i32
    return %arg0, %c0_i32, %c0_i32_0 : i32, i32, i32
  }
}

</mosaic_0001>

<llo_original>
// kernel: dsh_loss.1
$region0: #{dsh_loss.1}
  #allocation0 [shape = 'u32[]', space=smem, size = 0x4, offset = 0x4, fixed_abs, tag = 'smem constant byte address 0x4 - core index']
  #allocation1 [shape = 'u32[144,128]{1,0:T(1,128)}', space=vmem, size = 0x12000, scoped, tag = 'internal scratch']
  #allocation2 [shape = 'f32[8,2048]{1,0:T(8,128)}', space=vmem, size = 0x10000, scoped, tag = 'scratch operand']
  #allocation3 [shape = 'f32[8,1]{1,0:T(8,128)}', space=vmem, size = 0x1000, scoped, tag = 'scratch operand']
  %s0 = inlined_call_operand.vmem [shape: f32[8,16], index: 0, kind: input, shape index: {}]
  %s1 = inlined_call_operand.vmem [shape: bf16[8,4], index: 1, kind: input, shape index: {}]
  %s2 = inlined_call_operand.vmem [shape: f32[16,4096], index: 2, kind: input, shape index: {}]
  %s3 = inlined_call_operand.vmem [shape: bf16[4,4096], index: 3, kind: input, shape index: {}]
  %s4 = inlined_call_operand.vmem [shape: f32[2,8,128], index: 4, kind: output, shape index: {}]
  %s5 = sld [smem:[#allocation0]]
  $region80: #{dsh_loss.1} parent=0
    _
  %s7 = ssub.s32 1, %s5
  %s8 = scalar_select 0, %s7, %s5
  $region1: #{dsh_loss.1} parent=0
    #allocation4 [shape = 'u8[262144]{0}', space=vmem, size = 0x40000, scoped, tag = 'input window, operand 2']
    loop: start=0, step=1, limit=4
    $region2: #{dsh_loss.1} parent=1 // loop_pre_header
      _
    $region3: #{dsh_loss.1} parent=1 // loop_header
      %s10 = sphi 0, %s14
      %p11 = scmp.ge.s32.totalorder %s10, 4
      %s17 = sphi 0, %s29
      %s18 = sphi 0, %s25
      %s19 = sphi 0, %s17
      %s20 = sphi 0, %s18
      %s21 = sphi 0, %s19
      %s22 = sphi 0, %s20
      %s30 = sphi 0, %s30
      %s32 = sphi 0, %s30
      %s33 = sphi 0, %s32
      %s47 = sphi 0, %s33
      %s51 = sphi 0, %s51
      %s53 = sphi 0, %s51
      %s54 = sphi 0, %s53
      %s68 = sphi 0, %s54
      %s76 = sphi 0, %s78
      %s79 = sphi 0, %s76
      %s80 = sphi 0, %s79
      %s96 = sphi 0, %s80
      %s104 = sphi 0, %s106
      %s107 = sphi 0, %s104
      %s108 = sphi 0, %s107
      %s124 = sphi 0, %s108
      %s130 = sphi 0, %s132
      %s133 = sphi 0, %s130
      %s134 = sphi 0, %s133
      %s150 = sphi 0, %s134
    $region4: #{dsh_loss.1} parent=1 // loop_header_branch
      %13 = sbr.rel (%p11) target = $region8
    $region5: #{dsh_loss.1} parent=1 // loop_body
      %s15 = ssub.s32 %s10, 1
      %s16 = ssub.s32 %s10, 2
      %s23 = sadd.s32 1, %s18
      %p24 = scmp.ge.s32.totalorder %s23, 1
      %s25 = scalar_select %p24, 0, %s23
      %s26 = sadd.s32 1, %s17
      %s27 = scalar_select %p24, %s26, %s17
      %p28 = scmp.ge.s32.totalorder %s27, 2
      %s29 = scalar_select %p28, 0, %s27
      %s31 = sadd.s32 %s30, 1
      %p34 = scmp.eq.s32.totalorder %s10, 1
      %p35 = scmp.ne.s32.totalorder %s30, %s32
      %p36 = scmp.eq.s32.totalorder %s10, 0
      %p37 = por %p35, %p36
      %p38 = scmp.ne.s32.totalorder %s30, %s32
      %p39 = scmp.eq.s32.totalorder %s15, 1
      %p40 = por %p38, %p39
      %p41 = scmp.ne.s32.totalorder %s32, %s33
      %p42 = scmp.eq.s32.totalorder %s15, 0
      %p43 = por %p41, %p42
      %p44 = scmp.ne.s32.totalorder %s32, %s33
      %p45 = scmp.eq.s32.totalorder %s16, 1
      %p46 = por %p44, %p45
      %p48 = scmp.ne.s32.totalorder %s33, %s47
      %p49 = scmp.eq.s32.totalorder %s16, 0
      %p50 = por %p48, %p49
      %s52 = sadd.s32 %s51, 1
      %p55 = scmp.eq.s32.totalorder %s10, 1
      %p56 = scmp.ne.s32.totalorder %s51, %s53
      %p57 = scmp.eq.s32.totalorder %s10, 0
      %p58 = por %p56, %p57
      %p59 = scmp.ne.s32.totalorder %s51, %s53
      %p60 = scmp.eq.s32.totalorder %s15, 1
      %p61 = por %p59, %p60
      %p62 = scmp.ne.s32.totalorder %s53, %s54
      %p63 = scmp.eq.s32.totalorder %s15, 0
      %p64 = por %p62, %p63
      %p65 = scmp.ne.s32.totalorder %s53, %s54
      %p66 = scmp.eq.s32.totalorder %s16, 1
      %p67 = por %p65, %p66
      %p69 = scmp.ne.s32.totalorder %s54, %s68
      %p70 = scmp.eq.s32.totalorder %s16, 0
      %p71 = por %p69, %p70
      %s72 = sadd.s32 %s17, %s18
      %s73 = sadd.s32 %s29, %s25
      %s74 = ssub.s32 %s72, %s73
      %p75 = scmp.eq.s32.totalorder %s74, 0
      %s77 = sadd.s32 %s76, 1
      %s78 = scalar_select %p75, %s76, %s77
      %p81 = pneg %p75
      %p82 = scmp.eq.s32.totalorder %s10, 1
      %p83 = por %p81, %p82
      %p84 = scmp.ne.s32.totalorder %s76, %s79
      %p85 = scmp.eq.s32.totalorder %s10, 0
      %p86 = por %p84, %p85
      %p87 = scmp.ne.s32.totalorder %s76, %s79
      %p88 = scmp.eq.s32.totalorder %s15, 1
      %p89 = por %p87, %p88
      %p90 = scmp.ne.s32.totalorder %s79, %s80
      %p91 = scmp.eq.s32.totalorder %s15, 0
      %p92 = por %p90, %p91
      %p93 = scmp.ne.s32.totalorder %s79, %s80
      %p94 = scmp.eq.s32.totalorder %s16, 1
      %p95 = por %p93, %p94
      %p97 = scmp.ne.s32.totalorder %s80, %s96
      %p98 = scmp.eq.s32.totalorder %s16, 0
      %p99 = por %p97, %p98
      %s100 = sadd.s32 %s17, %s18
      %s101 = sadd.s32 %s29, %s25
      %s102 = ssub.s32 %s100, %s101
      %p103 = scmp.eq.s32.totalorder %s102, 0
      %s105 = sadd.s32 %s104, 1
      %s106 = scalar_select %p103, %s104, %s105
      %p109 = pneg %p103
      %p110 = scmp.eq.s32.totalorder %s10, 1
      %p111 = por %p109, %p110
      %p112 = scmp.ne.s32.totalorder %s104, %s107
      %p113 = scmp.eq.s32.totalorder %s10, 0
      %p114 = por %p112, %p113
      %p115 = scmp.ne.s32.totalorder %s104, %s107
      %p116 = scmp.eq.s32.totalorder %s15, 1
      %p117 = por %p115, %p116
      %p118 = scmp.ne.s32.totalorder %s107, %s108
      %p119 = scmp.eq.s32.totalorder %s15, 0
      %p120 = por %p118, %p119
      %p121 = scmp.ne.s32.totalorder %s107, %s108
      %p122 = scmp.eq.s32.totalorder %s16, 1
      %p123 = por %p121, %p122
      %p125 = scmp.ne.s32.totalorder %s108, %s124
      %p126 = scmp.eq.s32.totalorder %s16, 0
      %p127 = por %p125, %p126
      %s128 = ssub.s32 %s17, %s29
      %p129 = scmp.eq.s32.totalorder %s128, 0
      %s131 = sadd.s32 %s130, 1
      %s132 = scalar_select %p129, %s130, %s131
      %p135 = pneg %p129
      %p136 = scmp.eq.s32.totalorder %s10, 1
      %p137 = por %p135, %p136
      %p138 = scmp.ne.s32.totalorder %s130, %s133
      %p139 = scmp.eq.s32.totalorder %s10, 0
      %p140 = por %p138, %p139
      %p141 = scmp.ne.s32.totalorder %s130, %s133
      %p142 = scmp.eq.s32.totalorder %s15, 1
      %p143 = por %p141, %p142
      %p144 = scmp.ne.s32.totalorder %s133, %s134
      %p145 = scmp.eq.s32.totalorder %s15, 0
      %p146 = por %p144, %p145
      %p147 = scmp.ne.s32.totalorder %s133, %s134
      %p148 = scmp.eq.s32.totalorder %s16, 1
      %p149 = por %p147, %p148
      %p151 = scmp.ne.s32.totalorder %s134, %s150
      %p152 = scmp.eq.s32.totalorder %s16, 0
      %p153 = por %p151, %p152
      %p154 = scmp.le.s32.totalorder 1, %s10
      %p155 = scmp.lt.s32.totalorder %s10, 3
      %p156 = pnand %p154, %p155
      %p157 = pneg %p156
      // Predicated region
      $region9: #{dsh_loss.1} parent=5 // pred_check
        _
      $region10: #{dsh_loss.1} parent=5 // pred_check_branch
        %159 = sbr.rel (%p156) target = $region12
      $region11: #{dsh_loss.1} parent=5 // pred_region
        %s160 = ssub.s32 %s10, 1
        // Predicated region
        $region13: #{dsh_loss.1} parent=11 // pred_check
          %p161 = pneg %p43
        $region14: #{dsh_loss.1} parent=11 // pred_check_branch
          %163 = sbr.rel (%p161) target = $region16
        $region15: #{dsh_loss.1} parent=11 // pred_region
          _
        $region16: #{dsh_loss.1} parent=11 // pred_fallthru
          _
        // Predicated region
        $region17: #{dsh_loss.1} parent=11 // pred_check
          %p164 = pneg %p64
        $region18: #{dsh_loss.1} parent=11 // pred_check_branch
          %166 = sbr.rel (%p164) target = $region20
        $region19: #{dsh_loss.1} parent=11 // pred_region
          _
        $region20: #{dsh_loss.1} parent=11 // pred_fallthru
          _
      $region12: #{dsh_loss.1} parent=5 // pred_fallthru
        _
      %p167 = scmp.lt.s32.totalorder %s10, 2
      // Predicated region
      $region21: #{dsh_loss.1} parent=5 // pred_check
        %p168 = pneg %p167
      $region22: #{dsh_loss.1} parent=5 // pred_check_branch
        %170 = sbr.rel (%p168) target = $region24
      $region23: #{dsh_loss.1} parent=5 // pred_region
        // Predicated region
        $region25: #{dsh_loss.1} parent=23 // pred_check
          %p171 = pneg %p86
        $region26: #{dsh_loss.1} parent=23 // pred_check_branch
          %173 = sbr.rel (%p171) target = $region28
        $region27: #{dsh_loss.1} parent=23 // pred_region
          %s174 = sand.u32 %s76, 1
          %s175 = sand.u32 %s76, 1
          %s176 = smul.addr %s175, 256
          %s177 = scalar_lea.vmem [#allocation4], %s176
          %s178 = sadd.s32 %s17, %s18
          %s179 = smul.u32 16, %s178
          %s180 = smul.addr %s179, 8
          %s181 = scalar_lea.vmem %s2, %s180
          // Predicated region
          $region29: #{dsh_loss.1} parent=27 // pred_check
            _
          $region30: #{dsh_loss.1} parent=27 // pred_check_branch
            %183 = sbr.rel (0) target = $region32
          $region31: #{dsh_loss.1} parent=27 // pred_region
            // Predicated region
            $region33: #{dsh_loss.1} parent=31 // pred_check
              _
            $region34: #{dsh_loss.1} parent=31 // pred_check_branch
              %185 = sbr.rel (0) target = $region36
            $region35: #{dsh_loss.1} parent=31 // pred_region
              loop: start=0, step=1, limit=1
              $region37: #{dsh_loss.1} parent=35 // loop_pre_header
                _
              $region38: #{dsh_loss.1} parent=35 // loop_header
                %s187 = sphi 0, %s191
                %p188 = scmp.ge.s32.totalorder %s187, 1
                %s192 = sphi %s181, %s181
                %s193 = sphi %s177, %s177
              $region39: #{dsh_loss.1} parent=35 // loop_header_branch
                %190 = sbr.rel (%p188) target = $region43
              $region40: #{dsh_loss.1} parent=35 // loop_body
                %v194 = vld [vmem:[%s192] sm:$0xff]
                %195 = vst [vmem:[%s193] sm:$0xff] %v194
                %v196 = vld [vmem:[%s192 + $0x8] sm:$0xff]
                %197 = vst [vmem:[%s193 + $0x8] sm:$0xff] %v196
                %v198 = vld [vmem:[%s192 + $0x10] sm:$0xff]
                %199 = vst [vmem:[%s193 + $0x10] sm:$0xff] %v198
                %v200 = vld [vmem:[%s192 + $0x18] sm:$0xff]
                %201 = vst [vmem:[%s193 + $0x18] sm:$0xff] %v200
                %v202 = vld [vmem:[%s192 + $0x20] sm:$0xff]
                %203 = vst [vmem:[%s193 + $0x20] sm:$0xff] %v202
                %v204 = vld [vmem:[%s192 + $0x28] sm:$0xff]
                %205 = vst [vmem:[%s193 + $0x28] sm:$0xff] %v204
                %v206 = vld [vmem:[%s192 + $0x30] sm:$0xff]
                %207 = vst [vmem:[%s193 + $0x30] sm:$0xff] %v206
                %v208 = vld [vmem:[%s192 + $0x38] sm:$0xff]
                %209 = vst [vmem:[%s193 + $0x38] sm:$0xff] %v208
                %v210 = vld [vmem:[%s192 + $0x40] sm:$0xff]
                %211 = vst [vmem:[%s193 + $0x40] sm:$0xff] %v210
                %v212 = vld [vmem:[%s192 + $0x48] sm:$0xff]
                %213 = vst [vmem:[%s193 + $0x48] sm:$0xff] %v212
                %v214 = vld [vmem:[%s192 + $0x50] sm:$0xff]
                %215 = vst [vmem:[%s193 + $0x50] sm:$0xff] %v214
                %v216 = vld [vmem:[%s192 + $0x58] sm:$0xff]
                %217 = vst [vmem:[%s193 + $0x58] sm:$0xff] %v216
                %v218 = vld [vmem:[%s192 + $0x60] sm:$0xff]
                %219 = vst [vmem:[%s193 + $0x60] sm:$0xff] %v218
                %v220 = vld [vmem:[%s192 + $0x68] sm:$0xff]
                %221 = vst [vmem:[%s193 + $0x68] sm:$0xff] %v220
                %v222 = vld [vmem:[%s192 + $0x70] sm:$0xff]
                %223 = vst [vmem:[%s193 + $0x70] sm:$0xff] %v222
                %v224 = vld [vmem:[%s192 + $0x78] sm:$0xff]
                %225 = vst [vmem:[%s193 + $0x78] sm:$0xff] %v224
                %v226 = vld [vmem:[%s192 + $0x100] sm:$0xff]
                %227 = vst [vmem:[%s193 + $0x80] sm:$0xff] %v226
                %v228 = vld [vmem:[%s192 + $0x108] sm:$0xff]
                %229 = vst [vmem:[%s193 + $0x88] sm:$0xff] %v228
                %v230 = vld [vmem:[%s192 + $0x110] sm:$0xff]
                %231 = vst [vmem:[%s193 + $0x90] sm:$0xff] %v230
                %v232 = vld [vmem:[%s192 + $0x118] sm:$0xff]
                %233 = vst [vmem:[%s193 + $0x98] sm:$0xff] %v232
                %v234 = vld [vmem:[%s192 + $0x120] sm:$0xff]
                %235 = vst [vmem:[%s193 + $0xa0] sm:$0xff] %v234
                %v236 = vld [vmem:[%s192 + $0x128] sm:$0xff]
                %237 = vst [vmem:[%s193 + $0xa8] sm:$0xff] %v236
                %v238 = vld [vmem:[%s192 + $0x130] sm:$0xff]
                %239 = vst [vmem:[%s193 + $0xb0] sm:$0xff] %v238
                %v240 = vld [vmem:[%s192 + $0x138] sm:$0xff]
                %241 = vst [vmem:[%s193 + $0xb8] sm:$0xff] %v240
                %v242 = vld [vmem:[%s192 + $0x140] sm:$0xff]
                %243 = vst [vmem:[%s193 + $0xc0] sm:$0xff] %v242
                %v244 = vld [vmem:[%s192 + $0x148] sm:$0xff]
                %245 = vst [vmem:[%s193 + $0xc8] sm:$0xff] %v244
                %v246 = vld [vmem:[%s192 + $0x150] sm:$0xff]
                %247 = vst [vmem:[%s193 + $0xd0] sm:$0xff] %v246
                %v248 = vld [vmem:[%s192 + $0x158] sm:$0xff]
                %249 = vst [vmem:[%s193 + $0xd8] sm:$0xff] %v248
                %v250 = vld [vmem:[%s192 + $0x160] sm:$0xff]
                %251 = vst [vmem:[%s193 + $0xe0] sm:$0xff] %v250
                %v252 = vld [vmem:[%s192 + $0x168] sm:$0xff]
                %253 = vst [vmem:[%s193 + $0xe8] sm:$0xff] %v252
                %v254 = vld [vmem:[%s192 + $0x170] sm:$0xff]
                %255 = vst [vmem:[%s193 + $0xf0] sm:$0xff] %v254
                %v256 = vld [vmem:[%s192 + $0x178] sm:$0xff]
                %257 = vst [vmem:[%s193 + $0xf8] sm:$0xff] %v256
              $region41: #{dsh_loss.1} parent=35 // loop_footer
                %s191 = sadd.s32 1, %s187
              $region42: #{dsh_loss.1} parent=35 // loop_footer_branch
                %186 = sbr.rel target = $region38
              $region43: #{dsh_loss.1} parent=35 // loop_exit
                _
            $region36: #{dsh_loss.1} parent=31 // pred_fallthru
              _
            // Predicated region
            $region44: #{dsh_loss.1} parent=31 // pred_check
              _
            $region45: #{dsh_loss.1} parent=31 // pred_check_branch
              %259 = sbr.rel target = $region47
            $region46: #{dsh_loss.1} parent=31 // pred_region
              _
            $region47: #{dsh_loss.1} parent=31 // pred_fallthru
              _
          $region32: #{dsh_loss.1} parent=27 // pred_fallthru
            _
          %260 = vnop
        $region28: #{dsh_loss.1} parent=23 // pred_fallthru
          _
        // Predicated region
        $region48: #{dsh_loss.1} parent=23 // pred_check
          %p261 = pneg %p114
        $region49: #{dsh_loss.1} parent=23 // pred_check_branch
          %263 = sbr.rel (%p261) target = $region51
        $region50: #{dsh_loss.1} parent=23 // pred_region
          %s264 = sadd.s32 %s17, %s18
          %s265 = smul.u32 16, %s264
          %p266 = scmp.lt.s32.totalorder %s265, 31
          %s267 = scalar_select %p266, %s265, 31
          %s268 = smul.addr %s267, 2
          %s269 = scalar_lea.vmem %s3, %s268
          %s270 = sadd.s32 %s17, %s18
          %s271 = smul.u32 16, %s270
        $region51: #{dsh_loss.1} parent=23 // pred_fallthru
          _
      $region24: #{dsh_loss.1} parent=5 // pred_fallthru
        _
      %p272 = scmp.le.s32.totalorder 1, %s10
      %p273 = scmp.lt.s32.totalorder %s10, 3
      %p274 = pnand %p272, %p273
      %p275 = pneg %p274
      // Predicated region
      $region52: #{dsh_loss.1} parent=5 // pred_check
        _
      $region53: #{dsh_loss.1} parent=5 // pred_check_branch
        %277 = sbr.rel (%p274) target = $region55
      $region54: #{dsh_loss.1} parent=5 // pred_region
        %s278 = ssub.s32 %s10, 1
        %s279 = sand.u32 %s79, 1
        %s280 = sand.u32 %s79, 1
        %s281 = smul.addr %s280, 256
        %s282 = scalar_lea.vmem [#allocation4], %s281
        // Predicated region
        $region56: #{dsh_loss.1} parent=54 // pred_check
          %p283 = pneg %p92
        $region57: #{dsh_loss.1} parent=54 // pred_check_branch
          %285 = sbr.rel (%p283) target = $region59
        $region58: #{dsh_loss.1} parent=54 // pred_region
          _
        $region59: #{dsh_loss.1} parent=54 // pred_fallthru
          _
        %p286 = pneg %p43
        %p287 = pneg %p40
        %p288 = pneg %p64
        %p289 = pneg %p61
        %s290 = sand.u32 %s79, 1
        %s291 = sand.u32 %s79, 1
        %s292 = smul.addr %s291, 256
        %s293 = scalar_lea.vmem [#allocation4], %s292
        %p294 = pneg %p92
        %p295 = pneg %p89
        %s296 = sadd.s32 %s19, %s20
        %s297 = smul.u32 16, %s296
        %p298 = scmp.lt.s32.totalorder %s297, 31
        %s299 = scalar_select %p298, %s297, 31
        %s300 = smul.addr %s299, 2
        %s301 = scalar_lea.vmem %s3, %s300
        %p302 = pneg %p120
        %p303 = pneg %p117
        %p304 = pneg %p146
        %p305 = pneg %p143
        %p306 = scmp.lt.s32.totalorder %s19, 1
        %s307 = scalar_select %p306, %s19, 1
        %s308 = smul.addr %s307, 8
        %s309 = scalar_lea.vmem %s4, %s308
        %s310 = sadd.s32 %s19, %s20
        %s311 = smul.u32 16, %s310
        %s312 = sadd.s32 %s19, %s20
        %s313 = smul.u32 16, %s312
        %p314 = scmp.lt.s32.totalorder %s313, 31
        %s315 = scalar_select %p314, %s313, 31
        %s316 = smul.addr %s315, 2
        %s317 = scalar_lea.vmem %s3, %s316
        %s318 = sadd.s32 %s19, %s20
        %s319 = smul.u32 16, %s318
        %p320 = scmp.lt.s32.totalorder %s19, 1
        %s321 = scalar_select %p320, %s19, 1
        %s322 = smul.addr %s321, 8
        %s323 = scalar_lea.vmem %s4, %s322
        %p325 = scmp.eq.s32.totalorder %s20, 0
        // Predicated region
        $region60: #{dsh_loss.1} parent=54 // pred_check
          %p326 = pneg %p325
        $region61: #{dsh_loss.1} parent=54 // pred_check_branch
          %328 = sbr.rel (%p326) target = $region63
        $region62: #{dsh_loss.1} parent=54 // pred_region
          %329 = vst [vmem:[#allocation2] sm:$0xff] 0.0
          %330 = vst [vmem:[#allocation2 + $0x8] sm:$0xff] 0.0
          %331 = vst [vmem:[#allocation2 + $0x10] sm:$0xff] 0.0
          %332 = vst [vmem:[#allocation2 + $0x18] sm:$0xff] 0.0
          %333 = vst [vmem:[#allocation2 + $0x20] sm:$0xff] 0.0
          %334 = vst [vmem:[#allocation2 + $0x28] sm:$0xff] 0.0
          %335 = vst [vmem:[#allocation2 + $0x30] sm:$0xff] 0.0
          %336 = vst [vmem:[#allocation2 + $0x38] sm:$0xff] 0.0
          %337 = vst [vmem:[#allocation2 + $0x40] sm:$0xff] 0.0
          %338 = vst [vmem:[#allocation2 + $0x48] sm:$0xff] 0.0
          %339 = vst [vmem:[#allocation2 + $0x50] sm:$0xff] 0.0
          %340 = vst [vmem:[#allocation2 + $0x58] sm:$0xff] 0.0
          %341 = vst [vmem:[#allocation2 + $0x60] sm:$0xff] 0.0
          %342 = vst [vmem:[#allocation2 + $0x68] sm:$0xff] 0.0
          %343 = vst [vmem:[#allocation2 + $0x70] sm:$0xff] 0.0
          %344 = vst [vmem:[#allocation2 + $0x78] sm:$0xff] 0.0
          %v345 = vld [vmem:[%s0] sm:$0xff]
          %v346 = vmul.f32 %v345, %v345
          %vm347 = vcmask 130048
          %v348 = vsel %vm347, %v346, 0.0
          %349 = vadd.xlane.f32.xlu0 %v348
          %v350 = vpop.xlane.xlu0 %349
          %vm351 = vcmask 7168
          %352 = vst.msk [vmem:[#allocation3] sm:$0xff] %vm351, %v350
        $region63: #{dsh_loss.1} parent=54 // pred_fallthru
          _
        %v353 = vld [vmem:[%s0] sm:$0xff]
        %v354 = vld [vmem:[%s1] sm:$0xf]
        %v355 = vld [vmem:[%s282] sm:$0xff]
        %v356 = vld [vmem:[%s282 + $0x8] sm:$0xff]
        %v357 = vld [vmem:[%s282 + $0x10] sm:$0xff]
        %v358 = vld [vmem:[%s282 + $0x18] sm:$0xff]
        %v359 = vld [vmem:[%s282 + $0x20] sm:$0xff]
        %v360 = vld [vmem:[%s282 + $0x28] sm:$0xff]
        %v361 = vld [vmem:[%s282 + $0x30] sm:$0xff]
        %v362 = vld [vmem:[%s282 + $0x38] sm:$0xff]
        %v363 = vld [vmem:[%s282 + $0x40] sm:$0xff]
        %v364 = vld [vmem:[%s282 + $0x48] sm:$0xff]
        %v365 = vld [vmem:[%s282 + $0x50] sm:$0xff]
        %v366 = vld [vmem:[%s282 + $0x58] sm:$0xff]
        %v367 = vld [vmem:[%s282 + $0x60] sm:$0xff]
        %v368 = vld [vmem:[%s282 + $0x68] sm:$0xff]
        %v369 = vld [vmem:[%s282 + $0x70] sm:$0xff]
        %v370 = vld [vmem:[%s282 + $0x78] sm:$0xff]
        %v371 = vld [vmem:[%s282 + $0x80] sm:$0xff]
        %v372 = vld [vmem:[%s282 + $0x88] sm:$0xff]
        %v373 = vld [vmem:[%s282 + $0x90] sm:$0xff]
        %v374 = vld [vmem:[%s282 + $0x98] sm:$0xff]
        %v375 = vld [vmem:[%s282 + $0xa0] sm:$0xff]
        %v376 = vld [vmem:[%s282 + $0xa8] sm:$0xff]
        %v377 = vld [vmem:[%s282 + $0xb0] sm:$0xff]
        %v378 = vld [vmem:[%s282 + $0xb8] sm:$0xff]
        %v379 = vld [vmem:[%s282 + $0xc0] sm:$0xff]
        %v380 = vld [vmem:[%s282 + $0xc8] sm:$0xff]
        %v381 = vld [vmem:[%s282 + $0xd0] sm:$0xff]
        %v382 = vld [vmem:[%s282 + $0xd8] sm:$0xff]
        %v383 = vld [vmem:[%s282 + $0xe0] sm:$0xff]
        %v384 = vld [vmem:[%s282 + $0xe8] sm:$0xff]
        %v385 = vld [vmem:[%s282 + $0xf0] sm:$0xff]
        %v386 = vld [vmem:[%s282 + $0xf8] sm:$0xff]
        %v387 = vld [vmem:[%s317] sm:$0xff]
        %v388 = vld [vmem:[%s317 + $0x8] sm:$0xff]
        %v389 = vld [vmem:[%s317 + $0x10] sm:$0xff]
        %v390 = vld [vmem:[%s317 + $0x18] sm:$0xff]
        %vm391 = vcmask 130048
        %v393 = vsel %vm391, %v353, 0
        %395 = vmatprep.subr.mxu0 %v356
        %396 = vmatpush1.msra.mxu0 %v355
        %397 = vmatprep.subr.mxu0 %v372
        %398 = vmatpush1.msra.mxu0 %v371
        %399 = vmatprep.subr.mxu0 0.0
        %400 = vmatpush1.msra.mxu0 0.0
        %401 = vmatprep.subr.mxu0 0.0
        %402 = vmatpush1.msra.mxu0 0.0
        %403 = vmatprep.subr.mxu0 0.0
        %404 = vmatpush1.msra.mxu0 0.0
        %405 = vmatprep.subr.mxu0 0.0
        %406 = vmatpush1.msra.mxu0 0.0
        %407 = vmatprep.subr.mxu0 0.0
        %408 = vmatpush1.msra.mxu0 0.0
        %409 = vmatprep.subr.mxu0 0.0
        %410 = vmatpush1.msra.mxu0 0.0
        %411 = vmatprep.subr.mxu0 0.0
        %412 = vmatpush1.msra.mxu0 0.0
        %413 = vmatprep.subr.mxu0 0.0
        %414 = vmatpush1.msra.mxu0 0.0
        %415 = vmatprep.subr.mxu0 0.0
        %416 = vmatpush1.msra.mxu0 0.0
        %417 = vmatprep.subr.mxu0 0.0
        %418 = vmatpush1.msra.mxu0 0.0
        %419 = vmatprep.subr.mxu0 0.0
        %420 = vmatpush1.msra.mxu0 0.0
        %421 = vmatprep.subr.mxu0 0.0
        %422 = vmatpush1.msra.mxu0 0.0
        %423 = vmatprep.subr.mxu0 0.0
        %424 = vmatpush1.msra.mxu0 0.0
        %425 = vmatprep.subr.mxu0 0.0
        %426 = vmatpush1.msra.mxu0 0.0
        %427 = vmatprep.subr.mxu0 0.0
        %428 = vmatpush1.msra.mxu0 0.0
        %429 = vmatprep.subr.mxu0 0.0
        %430 = vmatpush1.msra.mxu0 0.0
        %431 = vmatprep.subr.mxu0 0.0
        %432 = vmatpush1.msra.mxu0 0.0
        %433 = vmatprep.subr.mxu0 0.0
        %434 = vmatpush1.msra.mxu0 0.0
        %435 = vmatprep.subr.mxu0 0.0
        %436 = vmatpush1.msra.mxu0 0.0
        %437 = vmatprep.subr.mxu0 0.0
        %438 = vmatpush1.msra.mxu0 0.0
        %439 = vmatprep.subr.mxu0 0.0
        %440 = vmatpush1.msra.mxu0 0.0
        %441 = vmatprep.subr.mxu0 0.0
        %442 = vmatpush1.msra.mxu0 0.0
        %443 = vmatprep.subr.mxu0 0.0
        %444 = vmatpush1.msra.mxu0 0.0
        %445 = vmatprep.subr.mxu0 0.0
        %446 = vmatpush1.msra.mxu0 0.0
        %447 = vmatprep.subr.mxu0 0.0
        %448 = vmatpush1.msra.mxu0 0.0
        %449 = vmatprep.subr.mxu0 0.0
        %450 = vmatpush1.msra.mxu0 0.0
        %451 = vmatprep.subr.mxu0 0.0
        %452 = vmatpush1.msra.mxu0 0.0
        %453 = vmatprep.subr.mxu0 0.0
        %454 = vmatpush1.msra.mxu0 0.0
        %455 = vmatprep.subr.mxu0 0.0
        %456 = vmatpush1.msra.mxu0 0.0
        %457 = vmatprep.subr.mxu0 0.0
        %458 = vmatpush1.msra.mxu0 0.0
        %459 = vmatprep.mubr.f32.mxu0 0.0
        %460 = vmatmul.mubr.f32.gmra.mrb[0].mxu0 %v393
        %v461 = vpop.f32.mrb[0].mxu0
        %v462 = vadd.f32 0.0, %v461
        %v463 = vpop.f32.mrb[0].mxu0
        %v464 = vadd.f32 0.0, %v463
        %465 = vdwg.mxu0
        %466 = vmatprep.subr.mxu0 %v358
        %467 = vmatpush1.msra.mxu0 %v357
        %468 = vmatprep.subr.mxu0 %v374
        %469 = vmatpush1.msra.mxu0 %v373
        %470 = vmatprep.subr.mxu0 0.0
        %471 = vmatpush1.msra.mxu0 0.0
        %472 = vmatprep.subr.mxu0 0.0
        %473 = vmatpush1.msra.mxu0 0.0
        %474 = vmatprep.subr.mxu0 0.0
        %475 = vmatpush1.msra.mxu0 0.0
        %476 = vmatprep.subr.mxu0 0.0
        %477 = vmatpush1.msra.mxu0 0.0
        %478 = vmatprep.subr.mxu0 0.0
        %479 = vmatpush1.msra.mxu0 0.0
        %480 = vmatprep.subr.mxu0 0.0
        %481 = vmatpush1.msra.mxu0 0.0
        %482 = vmatprep.subr.mxu0 0.0
        %483 = vmatpush1.msra.mxu0 0.0
        %484 = vmatprep.subr.mxu0 0.0
        %485 = vmatpush1.msra.mxu0 0.0
        %486 = vmatprep.subr.mxu0 0.0
        %487 = vmatpush1.msra.mxu0 0.0
        %488 = vmatprep.subr.mxu0 0.0
        %489 = vmatpush1.msra.mxu0 0.0
        %490 = vmatprep.subr.mxu0 0.0
        %491 = vmatpush1.msra.mxu0 0.0
        %492 = vmatprep.subr.mxu0 0.0
        %493 = vmatpush1.msra.mxu0 0.0
        %494 = vmatprep.subr.mxu0 0.0
        %495 = vmatpush1.msra.mxu0 0.0
        %496 = vmatprep.subr.mxu0 0.0
        %497 = vmatpush1.msra.mxu0 0.0
        %498 = vmatprep.subr.mxu0 0.0
        %499 = vmatpush1.msra.mxu0 0.0
        %500 = vmatprep.subr.mxu0 0.0
        %501 = vmatpush1.msra.mxu0 0.0
        %502 = vmatprep.subr.mxu0 0.0
        %503 = vmatpush1.msra.mxu0 0.0
        %504 = vmatprep.subr.mxu0 0.0
        %505 = vmatpush1.msra.mxu0 0.0
        %506 = vmatprep.subr.mxu0 0.0
        %507 = vmatpush1.msra.mxu0 0.0
        %508 = vmatprep.subr.mxu0 0.0
        %509 = vmatpush1.msra.mxu0 0.0
        %510 = vmatprep.subr.mxu0 0.0
        %511 = vmatpush1.msra.mxu0 0.0
        %512 = vmatprep.subr.mxu0 0.0
        %513 = vmatpush1.msra.mxu0 0.0
        %514 = vmatprep.subr.mxu0 0.0
        %515 = vmatpush1.msra.mxu0 0.0
        %516 = vmatprep.subr.mxu0 0.0
        %517 = vmatpush1.msra.mxu0 0.0
        %518 = vmatprep.subr.mxu0 0.0
        %519 = vmatpush1.msra.mxu0 0.0
        %520 = vmatprep.subr.mxu0 0.0
        %521 = vmatpush1.msra.mxu0 0.0
        %522 = vmatprep.subr.mxu0 0.0
        %523 = vmatpush1.msra.mxu0 0.0
        %524 = vmatprep.subr.mxu0 0.0
        %525 = vmatpush1.msra.mxu0 0.0
        %526 = vmatprep.subr.mxu0 0.0
        %527 = vmatpush1.msra.mxu0 0.0
        %528 = vmatprep.subr.mxu0 0.0
        %529 = vmatpush1.msra.mxu0 0.0
        %530 = vmatprep.mubr.f32.mxu0 0.0
        %531 = vmatmul.mubr.f32.gmra.mrb[0].mxu0 %v393
        %v532 = vpop.f32.mrb[0].mxu0
        %v533 = vadd.f32 0.0, %v532
        %v534 = vpop.f32.mrb[0].mxu0
        %v535 = vadd.f32 0.0, %v534
        %536 = vdwg.mxu0
        %537 = vmatprep.subr.mxu0 %v360
        %538 = vmatpush1.msra.mxu0 %v359
        %539 = vmatprep.subr.mxu0 %v376
        %540 = vmatpush1.msra.mxu0 %v375
        %541 = vmatprep.subr.mxu0 0.0
        %542 = vmatpush1.msra.mxu0 0.0
        %543 = vmatprep.subr.mxu0 0.0
        %544 = vmatpush1.msra.mxu0 0.0
        %545 = vmatprep.subr.mxu0 0.0
        %546 = vmatpush1.msra.mxu0 0.0
        %547 = vmatprep.subr.mxu0 0.0
        %548 = vmatpush1.msra.mxu0 0.0
        %549 = vmatprep.subr.mxu0 0.0
        %550 = vmatpush1.msra.mxu0 0.0
        %551 = vmatprep.subr.mxu0 0.0
        %552 = vmatpush1.msra.mxu0 0.0
        %553 = vmatprep.subr.mxu0 0.0
        %554 = vmatpush1.msra.mxu0 0.0
        %555 = vmatprep.subr.mxu0 0.0
        %556 = vmatpush1.msra.mxu0 0.0
        %557 = vmatprep.subr.mxu0 0.0
        %558 = vmatpush1.msra.mxu0 0.0
        %559 = vmatprep.subr.mxu0 0.0
        %560 = vmatpush1.msra.mxu0 0.0
        %561 = vmatprep.subr.mxu0 0.0
        %562 = vmatpush1.msra.mxu0 0.0
        %563 = vmatprep.subr.mxu0 0.0
        %564 = vmatpush1.msra.mxu0 0.0
        %565 = vmatprep.subr.mxu0 0.0
        %566 = vmatpush1.msra.mxu0 0.0
        %567 = vmatprep.subr.mxu0 0.0
        %568 = vmatpush1.msra.mxu0 0.0
        %569 = vmatprep.subr.mxu0 0.0
        %570 = vmatpush1.msra.mxu0 0.0
        %571 = vmatprep.subr.mxu0 0.0
        %572 = vmatpush1.msra.mxu0 0.0
        %573 = vmatprep.subr.mxu0 0.0
        %574 = vmatpush1.msra.mxu0 0.0
        %575 = vmatprep.subr.mxu0 0.0
        %576 = vmatpush1.msra.mxu0 0.0
        %577 = vmatprep.subr.mxu0 0.0
        %578 = vmatpush1.msra.mxu0 0.0
        %579 = vmatprep.subr.mxu0 0.0
        %580 = vmatpush1.msra.mxu0 0.0
        %581 = vmatprep.subr.mxu0 0.0
        %582 = vmatpush1.msra.mxu0 0.0
        %583 = vmatprep.subr.mxu0 0.0
        %584 = vmatpush1.msra.mxu0 0.0
        %585 = vmatprep.subr.mxu0 0.0
        %586 = vmatpush1.msra.mxu0 0.0
        %587 = vmatprep.subr.mxu0 0.0
        %588 = vmatpush1.msra.mxu0 0.0
        %589 = vmatprep.subr.mxu0 0.0
        %590 = vmatpush1.msra.mxu0 0.0
        %591 = vmatprep.subr.mxu0 0.0
        %592 = vmatpush1.msra.mxu0 0.0
        %593 = vmatprep.subr.mxu0 0.0
        %594 = vmatpush1.msra.mxu0 0.0
        %595 = vmatprep.subr.mxu0 0.0
        %596 = vmatpush1.msra.mxu0 0.0
        %597 = vmatprep.subr.mxu0 0.0
        %598 = vmatpush1.msra.mxu0 0.0
        %599 = vmatprep.subr.mxu0 0.0
        %600 = vmatpush1.msra.mxu0 0.0
        %601 = vmatprep.mubr.f32.mxu0 0.0
        %602 = vmatmul.mubr.f32.gmra.mrb[0].mxu0 %v393
        %v603 = vpop.f32.mrb[0].mxu0
        %v604 = vadd.f32 0.0, %v603
        %v605 = vpop.f32.mrb[0].mxu0
        %v606 = vadd.f32 0.0, %v605
        %607 = vdwg.mxu0
        %608 = vmatprep.subr.mxu0 %v362
        %609 = vmatpush1.msra.mxu0 %v361
        %610 = vmatprep.subr.mxu0 %v378
        %611 = vmatpush1.msra.mxu0 %v377
        %612 = vmatprep.subr.mxu0 0.0
        %613 = vmatpush1.msra.mxu0 0.0
        %614 = vmatprep.subr.mxu0 0.0
        %615 = vmatpush1.msra.mxu0 0.0
        %616 = vmatprep.subr.mxu0 0.0
        %617 = vmatpush1.msra.mxu0 0.0
        %618 = vmatprep.subr.mxu0 0.0
        %619 = vmatpush1.msra.mxu0 0.0
        %620 = vmatprep.subr.mxu0 0.0
        %621 = vmatpush1.msra.mxu0 0.0
        %622 = vmatprep.subr.mxu0 0.0
        %623 = vmatpush1.msra.mxu0 0.0
        %624 = vmatprep.subr.mxu0 0.0
        %625 = vmatpush1.msra.mxu0 0.0
        %626 = vmatprep.subr.mxu0 0.0
        %627 = vmatpush1.msra.mxu0 0.0
        %628 = vmatprep.subr.mxu0 0.0
        %629 = vmatpush1.msra.mxu0 0.0
        %630 = vmatprep.subr.mxu0 0.0
        %631 = vmatpush1.msra.mxu0 0.0
        %632 = vmatprep.subr.mxu0 0.0
        %633 = vmatpush1.msra.mxu0 0.0
        %634 = vmatprep.subr.mxu0 0.0
        %635 = vmatpush1.msra.mxu0 0.0
        %636 = vmatprep.subr.mxu0 0.0
        %637 = vmatpush1.msra.mxu0 0.0
        %638 = vmatprep.subr.mxu0 0.0
        %639 = vmatpush1.msra.mxu0 0.0
        %640 = vmatprep.subr.mxu0 0.0
        %641 = vmatpush1.msra.mxu0 0.0
        %642 = vmatprep.subr.mxu0 0.0
        %643 = vmatpush1.msra.mxu0 0.0
        %644 = vmatprep.subr.mxu0 0.0
        %645 = vmatpush1.msra.mxu0 0.0
        %646 = vmatprep.subr.mxu0 0.0
        %647 = vmatpush1.msra.mxu0 0.0
        %648 = vmatprep.subr.mxu0 0.0
        %649 = vmatpush1.msra.mxu0 0.0
        %650 = vmatprep.subr.mxu0 0.0
        %651 = vmatpush1.msra.mxu0 0.0
        %652 = vmatprep.subr.mxu0 0.0
        %653 = vmatpush1.msra.mxu0 0.0
        %654 = vmatprep.subr.mxu0 0.0
        %655 = vmatpush1.msra.mxu0 0.0
        %656 = vmatprep.subr.mxu0 0.0
        %657 = vmatpush1.msra.mxu0 0.0
        %658 = vmatprep.subr.mxu0 0.0
        %659 = vmatpush1.msra.mxu0 0.0
        %660 = vmatprep.subr.mxu0 0.0
        %661 = vmatpush1.msra.mxu0 0.0
        %662 = vmatprep.subr.mxu0 0.0
        %663 = vmatpush1.msra.mxu0 0.0
        %664 = vmatprep.subr.mxu0 0.0
        %665 = vmatpush1.msra.mxu0 0.0
        %666 = vmatprep.subr.mxu0 0.0
        %667 = vmatpush1.msra.mxu0 0.0
        %668 = vmatprep.subr.mxu0 0.0
        %669 = vmatpush1.msra.mxu0 0.0
        %670 = vmatprep.subr.mxu0 0.0
        %671 = vmatpush1.msra.mxu0 0.0
        %672 = vmatprep.mubr.f32.mxu0 0.0
        %673 = vmatmul.mubr.f32.gmra.mrb[0].mxu0 %v393
        %v674 = vpop.f32.mrb[0].mxu0
        %v675 = vadd.f32 0.0, %v674
        %v676 = vpop.f32.mrb[0].mxu0
        %v677 = vadd.f32 0.0, %v676
        %678 = vdwg.mxu0
        %679 = vmatprep.subr.mxu0 %v364
        %680 = vmatpush1.msra.mxu0 %v363
        %681 = vmatprep.subr.mxu0 %v380
        %682 = vmatpush1.msra.mxu0 %v379
        %683 = vmatprep.subr.mxu0 0.0
        %684 = vmatpush1.msra.mxu0 0.0
        %685 = vmatprep.subr.mxu0 0.0
        %686 = vmatpush1.msra.mxu0 0.0
        %687 = vmatprep.subr.mxu0 0.0
        %688 = vmatpush1.msra.mxu0 0.0
        %689 = vmatprep.subr.mxu0 0.0
        %690 = vmatpush1.msra.mxu0 0.0
        %691 = vmatprep.subr.mxu0 0.0
        %692 = vmatpush1.msra.mxu0 0.0
        %693 = vmatprep.subr.mxu0 0.0
        %694 = vmatpush1.msra.mxu0 0.0
        %695 = vmatprep.subr.mxu0 0.0
        %696 = vmatpush1.msra.mxu0 0.0
        %697 = vmatprep.subr.mxu0 0.0
        %698 = vmatpush1.msra.mxu0 0.0
        %699 = vmatprep.subr.mxu0 0.0
        %700 = vmatpush1.msra.mxu0 0.0
        %701 = vmatprep.subr.mxu0 0.0
        %702 = vmatpush1.msra.mxu0 0.0
        %703 = vmatprep.subr.mxu0 0.0
        %704 = vmatpush1.msra.mxu0 0.0
        %705 = vmatprep.subr.mxu0 0.0
        %706 = vmatpush1.msra.mxu0 0.0
        %707 = vmatprep.subr.mxu0 0.0
        %708 = vmatpush1.msra.mxu0 0.0
        %709 = vmatprep.subr.mxu0 0.0
        %710 = vmatpush1.msra.mxu0 0.0
        %711 = vmatprep.subr.mxu0 0.0
        %712 = vmatpush1.msra.mxu0 0.0
        %713 = vmatprep.subr.mxu0 0.0
        %714 = vmatpush1.msra.mxu0 0.0
        %715 = vmatprep.subr.mxu0 0.0
        %716 = vmatpush1.msra.mxu0 0.0
        %717 = vmatprep.subr.mxu0 0.0
        %718 = vmatpush1.msra.mxu0 0.0
        %719 = vmatprep.subr.mxu0 0.0
        %720 = vmatpush1.msra.mxu0 0.0
        %721 = vmatprep.subr.mxu0 0.0
        %722 = vmatpush1.msra.mxu0 0.0
        %723 = vmatprep.subr.mxu0 0.0
        %724 = vmatpush1.msra.mxu0 0.0
        %725 = vmatprep.subr.mxu0 0.0
        %726 = vmatpush1.msra.mxu0 0.0
        %727 = vmatprep.subr.mxu0 0.0
        %728 = vmatpush1.msra.mxu0 0.0
        %729 = vmatprep.subr.mxu0 0.0
        %730 = vmatpush1.msra.mxu0 0.0
        %731 = vmatprep.subr.mxu0 0.0
        %732 = vmatpush1.msra.mxu0 0.0
        %733 = vmatprep.subr.mxu0 0.0
        %734 = vmatpush1.msra.mxu0 0.0
        %735 = vmatprep.subr.mxu0 0.0
        %736 = vmatpush1.msra.mxu0 0.0
        %737 = vmatprep.subr.mxu0 0.0
        %738 = vmatpush1.msra.mxu0 0.0
        %739 = vmatprep.subr.mxu0 0.0
        %740 = vmatpush1.msra.mxu0 0.0
        %741 = vmatprep.subr.mxu0 0.0
        %742 = vmatpush1.msra.mxu0 0.0
        %743 = vmatprep.mubr.f32.mxu0 0.0
        %744 = vmatmul.mubr.f32.gmra.mrb[0].mxu0 %v393
        %v745 = vpop.f32.mrb[0].mxu0
        %v746 = vadd.f32 0.0, %v745
        %v747 = vpop.f32.mrb[0].mxu0
        %v748 = vadd.f32 0.0, %v747
        %749 = vdwg.mxu0
        %750 = vmatprep.subr.mxu0 %v366
        %751 = vmatpush1.msra.mxu0 %v365
        %752 = vmatprep.subr.mxu0 %v382
        %753 = vmatpush1.msra.mxu0 %v381
        %754 = vmatprep.subr.mxu0 0.0
        %755 = vmatpush1.msra.mxu0 0.0
        %756 = vmatprep.subr.mxu0 0.0
        %757 = vmatpush1.msra.mxu0 0.0
        %758 = vmatprep.subr.mxu0 0.0
        %759 = vmatpush1.msra.mxu0 0.0
        %760 = vmatprep.subr.mxu0 0.0
        %761 = vmatpush1.msra.mxu0 0.0
        %762 = vmatprep.subr.mxu0 0.0
        %763 = vmatpush1.msra.mxu0 0.0
        %764 = vmatprep.subr.mxu0 0.0
        %765 = vmatpush1.msra.mxu0 0.0
        %766 = vmatprep.subr.mxu0 0.0
        %767 = vmatpush1.msra.mxu0 0.0
        %768 = vmatprep.subr.mxu0 0.0
        %769 = vmatpush1.msra.mxu0 0.0
        %770 = vmatprep.subr.mxu0 0.0
        %771 = vmatpush1.msra.mxu0 0.0
        %772 = vmatprep.subr.mxu0 0.0
        %773 = vmatpush1.msra.mxu0 0.0
        %774 = vmatprep.subr.mxu0 0.0
        %775 = vmatpush1.msra.mxu0 0.0
        %776 = vmatprep.subr.mxu0 0.0
        %777 = vmatpush1.msra.mxu0 0.0
        %778 = vmatprep.subr.mxu0 0.0
        %779 = vmatpush1.msra.mxu0 0.0
        %780 = vmatprep.subr.mxu0 0.0
        %781 = vmatpush1.msra.mxu0 0.0
        %782 = vmatprep.subr.mxu0 0.0
        %783 = vmatpush1.msra.mxu0 0.0
        %784 = vmatprep.subr.mxu0 0.0
        %785 = vmatpush1.msra.mxu0 0.0
        %786 = vmatprep.subr.mxu0 0.0
        %787 = vmatpush1.msra.mxu0 0.0
        %788 = vmatprep.subr.mxu0 0.0
        %789 = vmatpush1.msra.mxu0 0.0
        %790 = vmatprep.subr.mxu0 0.0
        %791 = vmatpush1.msra.mxu0 0.0
        %792 = vmatprep.subr.mxu0 0.0
        %793 = vmatpush1.msra.mxu0 0.0
        %794 = vmatprep.subr.mxu0 0.0
        %795 = vmatpush1.msra.mxu0 0.0
        %796 = vmatprep.subr.mxu0 0.0
        %797 = vmatpush1.msra.mxu0 0.0
        %798 = vmatprep.subr.mxu0 0.0
        %799 = vmatpush1.msra.mxu0 0.0
        %800 = vmatprep.subr.mxu0 0.0
        %801 = vmatpush1.msra.mxu0 0.0
        %802 = vmatprep.subr.mxu0 0.0
        %803 = vmatpush1.msra.mxu0 0.0
        %804 = vmatprep.subr.mxu0 0.0
        %805 = vmatpush1.msra.mxu0 0.0
        %806 = vmatprep.subr.mxu0 0.0
        %807 = vmatpush1.msra.mxu0 0.0
        %808 = vmatprep.subr.mxu0 0.0
        %809 = vmatpush1.msra.mxu0 0.0
        %810 = vmatprep.subr.mxu0 0.0
        %811 = vmatpush1.msra.mxu0 0.0
        %812 = vmatprep.subr.mxu0 0.0
        %813 = vmatpush1.msra.mxu0 0.0
        %814 = vmatprep.mubr.f32.mxu0 0.0
        %815 = vmatmul.mubr.f32.gmra.mrb[0].mxu0 %v393
        %v816 = vpop.f32.mrb[0].mxu0
        %v817 = vadd.f32 0.0, %v816
        %v818 = vpop.f32.mrb[0].mxu0
        %v819 = vadd.f32 0.0, %v818
        %820 = vdwg.mxu0
        %821 = vmatprep.subr.mxu0 %v368
        %822 = vmatpush1.msra.mxu0 %v367
        %823 = vmatprep.subr.mxu0 %v384
        %824 = vmatpush1.msra.mxu0 %v383
        %825 = vmatprep.subr.mxu0 0.0
        %826 = vmatpush1.msra.mxu0 0.0
        %827 = vmatprep.subr.mxu0 0.0
        %828 = vmatpush1.msra.mxu0 0.0
        %829 = vmatprep.subr.mxu0 0.0
        %830 = vmatpush1.msra.mxu0 0.0
        %831 = vmatprep.subr.mxu0 0.0
        %832 = vmatpush1.msra.mxu0 0.0
        %833 = vmatprep.subr.mxu0 0.0
        %834 = vmatpush1.msra.mxu0 0.0
        %835 = vmatprep.subr.mxu0 0.0
        %836 = vmatpush1.msra.mxu0 0.0
        %837 = vmatprep.subr.mxu0 0.0
        %838 = vmatpush1.msra.mxu0 0.0
        %839 = vmatprep.subr.mxu0 0.0
        %840 = vmatpush1.msra.mxu0 0.0
        %841 = vmatprep.subr.mxu0 0.0
        %842 = vmatpush1.msra.mxu0 0.0
        %843 = vmatprep.subr.mxu0 0.0
        %844 = vmatpush1.msra.mxu0 0.0
        %845 = vmatprep.subr.mxu0 0.0
        %846 = vmatpush1.msra.mxu0 0.0
        %847 = vmatprep.subr.mxu0 0.0
        %848 = vmatpush1.msra.mxu0 0.0
        %849 = vmatprep.subr.mxu0 0.0
        %850 = vmatpush1.msra.mxu0 0.0
        %851 = vmatprep.subr.mxu0 0.0
        %852 = vmatpush1.msra.mxu0 0.0
        %853 = vmatprep.subr.mxu0 0.0
        %854 = vmatpush1.msra.mxu0 0.0
        %855 = vmatprep.subr.mxu0 0.0
        %856 = vmatpush1.msra.mxu0 0.0
        %857 = vmatprep.subr.mxu0 0.0
        %858 = vmatpush1.msra.mxu0 0.0
        %859 = vmatprep.subr.mxu0 0.0
        %860 = vmatpush1.msra.mxu0 0.0
        %861 = vmatprep.subr.mxu0 0.0
        %862 = vmatpush1.msra.mxu0 0.0
        %863 = vmatprep.subr.mxu0 0.0
        %864 = vmatpush1.msra.mxu0 0.0
        %865 = vmatprep.subr.mxu0 0.0
        %866 = vmatpush1.msra.mxu0 0.0
        %867 = vmatprep.subr.mxu0 0.0
        %868 = vmatpush1.msra.mxu0 0.0
        %869 = vmatprep.subr.mxu0 0.0
        %870 = vmatpush1.msra.mxu0 0.0
        %871 = vmatprep.subr.mxu0 0.0
        %872 = vmatpush1.msra.mxu0 0.0
        %873 = vmatprep.subr.mxu0 0.0
        %874 = vmatpush1.msra.mxu0 0.0
        %875 = vmatprep.subr.mxu0 0.0
        %876 = vmatpush1.msra.mxu0 0.0
        %877 = vmatprep.subr.mxu0 0.0
        %878 = vmatpush1.msra.mxu0 0.0
        %879 = vmatprep.subr.mxu0 0.0
        %880 = vmatpush1.msra.mxu0 0.0
        %881 = vmatprep.subr.mxu0 0.0
        %882 = vmatpush1.msra.mxu0 0.0
        %883 = vmatprep.subr.mxu0 0.0
        %884 = vmatpush1.msra.mxu0 0.0
        %885 = vmatprep.mubr.f32.mxu0 0.0
        %886 = vmatmul.mubr.f32.gmra.mrb[0].mxu0 %v393
        %v887 = vpop.f32.mrb[0].mxu0
        %v888 = vadd.f32 0.0, %v887
        %v889 = vpop.f32.mrb[0].mxu0
        %v890 = vadd.f32 0.0, %v889
        %891 = vdwg.mxu0
        %892 = vmatprep.subr.mxu0 %v370
        %893 = vmatpush1.msra.mxu0 %v369
        %894 = vmatprep.subr.mxu0 %v386
        %895 = vmatpush1.msra.mxu0 %v385
        %896 = vmatprep.subr.mxu0 0.0
        %897 = vmatpush1.msra.mxu0 0.0
        %898 = vmatprep.subr.mxu0 0.0
        %899 = vmatpush1.msra.mxu0 0.0
        %900 = vmatprep.subr.mxu0 0.0
        %901 = vmatpush1.msra.mxu0 0.0
        %902 = vmatprep.subr.mxu0 0.0
        %903 = vmatpush1.msra.mxu0 0.0
        %904 = vmatprep.subr.mxu0 0.0
        %905 = vmatpush1.msra.mxu0 0.0
        %906 = vmatprep.subr.mxu0 0.0
        %907 = vmatpush1.msra.mxu0 0.0
        %908 = vmatprep.subr.mxu0 0.0
        %909 = vmatpush1.msra.mxu0 0.0
        %910 = vmatprep.subr.mxu0 0.0
        %911 = vmatpush1.msra.mxu0 0.0
        %912 = vmatprep.subr.mxu0 0.0
        %913 = vmatpush1.msra.mxu0 0.0
        %914 = vmatprep.subr.mxu0 0.0
        %915 = vmatpush1.msra.mxu0 0.0
        %916 = vmatprep.subr.mxu0 0.0
        %917 = vmatpush1.msra.mxu0 0.0
        %918 = vmatprep.subr.mxu0 0.0
        %919 = vmatpush1.msra.mxu0 0.0
        %920 = vmatprep.subr.mxu0 0.0
        %921 = vmatpush1.msra.mxu0 0.0
        %922 = vmatprep.subr.mxu0 0.0
        %923 = vmatpush1.msra.mxu0 0.0
        %924 = vmatprep.subr.mxu0 0.0
        %925 = vmatpush1.msra.mxu0 0.0
        %926 = vmatprep.subr.mxu0 0.0
        %927 = vmatpush1.msra.mxu0 0.0
        %928 = vmatprep.subr.mxu0 0.0
        %929 = vmatpush1.msra.mxu0 0.0
        %930 = vmatprep.subr.mxu0 0.0
        %931 = vmatpush1.msra.mxu0 0.0
        %932 = vmatprep.subr.mxu0 0.0
        %933 = vmatpush1.msra.mxu0 0.0
        %934 = vmatprep.subr.mxu0 0.0
        %935 = vmatpush1.msra.mxu0 0.0
        %936 = vmatprep.subr.mxu0 0.0
        %937 = vmatpush1.msra.mxu0 0.0
        %938 = vmatprep.subr.mxu0 0.0
        %939 = vmatpush1.msra.mxu0 0.0
        %940 = vmatprep.subr.mxu0 0.0
        %941 = vmatpush1.msra.mxu0 0.0
        %942 = vmatprep.subr.mxu0 0.0
        %943 = vmatpush1.msra.mxu0 0.0
        %944 = vmatprep.subr.mxu0 0.0
        %945 = vmatpush1.msra.mxu0 0.0
        %946 = vmatprep.subr.mxu0 0.0
        %947 = vmatpush1.msra.mxu0 0.0
        %948 = vmatprep.subr.mxu0 0.0
        %949 = vmatpush1.msra.mxu0 0.0
        %950 = vmatprep.subr.mxu0 0.0
        %951 = vmatpush1.msra.mxu0 0.0
        %952 = vmatprep.subr.mxu0 0.0
        %953 = vmatpush1.msra.mxu0 0.0
        %954 = vmatprep.subr.mxu0 0.0
        %955 = vmatpush1.msra.mxu0 0.0
        %956 = vmatprep.mubr.f32.mxu0 0.0
        %957 = vmatmul.mubr.f32.gmra.mrb[0].mxu0 %v393
        %v958 = vpop.f32.mrb[0].mxu0
        %v959 = vadd.f32 0.0, %v958
        %v960 = vpop.f32.mrb[0].mxu0
        %v961 = vadd.f32 0.0, %v960
        %962 = vdwg.mxu0
        %v963 = vld [vmem:[#allocation3] sm:$0xff]
        %v964 = vmul.f32 %v355, %v355
        %v965 = vmul.f32 %v356, %v356
        %v966 = vmul.f32 %v357, %v357
        %v967 = vmul.f32 %v358, %v358
        %v968 = vmul.f32 %v359, %v359
        %v969 = vmul.f32 %v360, %v360
        %v970 = vmul.f32 %v361, %v361
        %v971 = vmul.f32 %v362, %v362
        %v972 = vmul.f32 %v363, %v363
        %v973 = vmul.f32 %v364, %v364
        %v974 = vmul.f32 %v365, %v365
        %v975 = vmul.f32 %v366, %v366
        %v976 = vmul.f32 %v367, %v367
        %v977 = vmul.f32 %v368, %v368
        %v978 = vmul.f32 %v369, %v369
        %v979 = vmul.f32 %v370, %v370
        %v980 = vmul.f32 %v371, %v371
        %v981 = vmul.f32 %v372, %v372
        %v982 = vmul.f32 %v373, %v373
        %v983 = vmul.f32 %v374, %v374
        %v984 = vmul.f32 %v375, %v375
        %v985 = vmul.f32 %v376, %v376
        %v986 = vmul.f32 %v377, %v377
        %v987 = vmul.f32 %v378, %v378
        %v988 = vmul.f32 %v379, %v379
        %v989 = vmul.f32 %v380, %v380
        %v990 = vmul.f32 %v381, %v381
        %v991 = vmul.f32 %v382, %v382
        %v992 = vmul.f32 %v383, %v383
        %v993 = vmul.f32 %v384, %v384
        %v994 = vmul.f32 %v385, %v385
        %v995 = vmul.f32 %v386, %v386
        %v996 = vadd.f32 %v964, %v980
        %v997 = vrot.slane %v996, 4
        %v998 = vadd.f32 %v996, %v997
        %v999 = vrot.slane %v998, 2
        %v1000 = vadd.f32 %v998, %v999
        %v1001 = vrot.slane %v1000, 1
        %v1002 = vadd.f32 %v1000, %v1001
        %v1003 = vadd.f32 %v965, %v981
        %v1004 = vrot.slane %v1003, 4
        %v1005 = vadd.f32 %v1003, %v1004
        %v1006 = vrot.slane %v1005, 2
        %v1007 = vadd.f32 %v1005, %v1006
        %v1008 = vrot.slane %v1007, 1
        %v1009 = vadd.f32 %v1007, %v1008
        %v1010 = vadd.f32 %v966, %v982
        %v1011 = vrot.slane %v1010, 4
        %v1012 = vadd.f32 %v1010, %v1011
        %v1013 = vrot.slane %v1012, 2
        %v1014 = vadd.f32 %v1012, %v1013
        %v1015 = vrot.slane %v1014, 1
        %v1016 = vadd.f32 %v1014, %v1015
        %v1017 = vadd.f32 %v967, %v983
        %v1018 = vrot.slane %v1017, 4
        %v1019 = vadd.f32 %v1017, %v1018
        %v1020 = vrot.slane %v1019, 2
        %v1021 = vadd.f32 %v1019, %v1020
        %v1022 = vrot.slane %v1021, 1
        %v1023 = vadd.f32 %v1021, %v1022
        %v1024 = vadd.f32 %v968, %v984
        %v1025 = vrot.slane %v1024, 4
        %v1026 = vadd.f32 %v1024, %v1025
        %v1027 = vrot.slane %v1026, 2
        %v1028 = vadd.f32 %v1026, %v1027
        %v1029 = vrot.slane %v1028, 1
        %v1030 = vadd.f32 %v1028, %v1029
        %v1031 = vadd.f32 %v969, %v985
        %v1032 = vrot.slane %v1031, 4
        %v1033 = vadd.f32 %v1031, %v1032
        %v1034 = vrot.slane %v1033, 2
        %v1035 = vadd.f32 %v1033, %v1034
        %v1036 = vrot.slane %v1035, 1
        %v1037 = vadd.f32 %v1035, %v1036
        %v1038 = vadd.f32 %v970, %v986
        %v1039 = vrot.slane %v1038, 4
        %v1040 = vadd.f32 %v1038, %v1039
        %v1041 = vrot.slane %v1040, 2
        %v1042 = vadd.f32 %v1040, %v1041
        %v1043 = vrot.slane %v1042, 1
        %v1044 = vadd.f32 %v1042, %v1043
        %v1045 = vadd.f32 %v971, %v987
        %v1046 = vrot.slane %v1045, 4
        %v1047 = vadd.f32 %v1045, %v1046
        %v1048 = vrot.slane %v1047, 2
        %v1049 = vadd.f32 %v1047, %v1048
        %v1050 = vrot.slane %v1049, 1
        %v1051 = vadd.f32 %v1049, %v1050
        %v1052 = vadd.f32 %v972, %v988
        %v1053 = vrot.slane %v1052, 4
        %v1054 = vadd.f32 %v1052, %v1053
        %v1055 = vrot.slane %v1054, 2
        %v1056 = vadd.f32 %v1054, %v1055
        %v1057 = vrot.slane %v1056, 1
        %v1058 = vadd.f32 %v1056, %v1057
        %v1059 = vadd.f32 %v973, %v989
        %v1060 = vrot.slane %v1059, 4
        %v1061 = vadd.f32 %v1059, %v1060
        %v1062 = vrot.slane %v1061, 2
        %v1063 = vadd.f32 %v1061, %v1062
        %v1064 = vrot.slane %v1063, 1
        %v1065 = vadd.f32 %v1063, %v1064
        %v1066 = vadd.f32 %v974, %v990
        %v1067 = vrot.slane %v1066, 4
        %v1068 = vadd.f32 %v1066, %v1067
        %v1069 = vrot.slane %v1068, 2
        %v1070 = vadd.f32 %v1068, %v1069
        %v1071 = vrot.slane %v1070, 1
        %v1072 = vadd.f32 %v1070, %v1071
        %v1073 = vadd.f32 %v975, %v991
        %v1074 = vrot.slane %v1073, 4
        %v1075 = vadd.f32 %v1073, %v1074
        %v1076 = vrot.slane %v1075, 2
        %v1077 = vadd.f32 %v1075, %v1076
        %v1078 = vrot.slane %v1077, 1
        %v1079 = vadd.f32 %v1077, %v1078
        %v1080 = vadd.f32 %v976, %v992
        %v1081 = vrot.slane %v1080, 4
        %v1082 = vadd.f32 %v1080, %v1081
        %v1083 = vrot.slane %v1082, 2
        %v1084 = vadd.f32 %v1082, %v1083
        %v1085 = vrot.slane %v1084, 1
        %v1086 = vadd.f32 %v1084, %v1085
        %v1087 = vadd.f32 %v977, %v993
        %v1088 = vrot.slane %v1087, 4
        %v1089 = vadd.f32 %v1087, %v1088
        %v1090 = vrot.slane %v1089, 2
        %v1091 = vadd.f32 %v1089, %v1090
        %v1092 = vrot.slane %v1091, 1
        %v1093 = vadd.f32 %v1091, %v1092
        %v1094 = vadd.f32 %v978, %v994
        %v1095 = vrot.slane %v1094, 4
        %v1096 = vadd.f32 %v1094, %v1095
        %v1097 = vrot.slane %v1096, 2
        %v1098 = vadd.f32 %v1096, %v1097
        %v1099 = vrot.slane %v1098, 1
        %v1100 = vadd.f32 %v1098, %v1099
        %v1101 = vadd.f32 %v979, %v995
        %v1102 = vrot.slane %v1101, 4
        %v1103 = vadd.f32 %v1101, %v1102
        %v1104 = vrot.slane %v1103, 2
        %v1105 = vadd.f32 %v1103, %v1104
        %v1106 = vrot.slane %v1105, 1
        %v1107 = vadd.f32 %v1105, %v1106
        %1109 = vset.pattern.permute.xlu0 0
        %1110 = vperm.xlu0 %1109, %v963
        %v1111 = vpop.permute.xlu0 %1110
        %v1113 = vadd.f32 %v1111, %v1002
        %v1114 = vadd.f32 %v1111, %v1009
        %v1115 = vadd.f32 %v1111, %v1016
        %v1116 = vadd.f32 %v1111, %v1023
        %v1117 = vadd.f32 %v1111, %v1030
        %v1118 = vadd.f32 %v1111, %v1037
        %v1119 = vadd.f32 %v1111, %v1044
        %v1120 = vadd.f32 %v1111, %v1051
        %v1121 = vadd.f32 %v1111, %v1058
        %v1122 = vadd.f32 %v1111, %v1065
        %v1123 = vadd.f32 %v1111, %v1072
        %v1124 = vadd.f32 %v1111, %v1079
        %v1125 = vadd.f32 %v1111, %v1086
        %v1126 = vadd.f32 %v1111, %v1093
        %v1127 = vadd.f32 %v1111, %v1100
        %v1128 = vadd.f32 %v1111, %v1107
        %v1129 = vmul.f32 %v462, 2.0
        %v1130 = vmul.f32 %v464, 2.0
        %v1131 = vmul.f32 %v533, 2.0
        %v1132 = vmul.f32 %v535, 2.0
        %v1133 = vmul.f32 %v604, 2.0
        %v1134 = vmul.f32 %v606, 2.0
        %v1135 = vmul.f32 %v675, 2.0
        %v1136 = vmul.f32 %v677, 2.0
        %v1137 = vmul.f32 %v746, 2.0
        %v1138 = vmul.f32 %v748, 2.0
        %v1139 = vmul.f32 %v817, 2.0
        %v1140 = vmul.f32 %v819, 2.0
        %v1141 = vmul.f32 %v888, 2.0
        %v1142 = vmul.f32 %v890, 2.0
        %v1143 = vmul.f32 %v959, 2.0
        %v1144 = vmul.f32 %v961, 2.0
        %v1145 = vsub.f32 %v1113, %v1129
        %v1146 = vsub.f32 %v1114, %v1130
        %v1147 = vsub.f32 %v1115, %v1131
        %v1148 = vsub.f32 %v1116, %v1132
        %v1149 = vsub.f32 %v1117, %v1133
        %v1150 = vsub.f32 %v1118, %v1134
        %v1151 = vsub.f32 %v1119, %v1135
        %v1152 = vsub.f32 %v1120, %v1136
        %v1153 = vsub.f32 %v1121, %v1137
        %v1154 = vsub.f32 %v1122, %v1138
        %v1155 = vsub.f32 %v1123, %v1139
        %v1156 = vsub.f32 %v1124, %v1140
        %v1157 = vsub.f32 %v1125, %v1141
        %v1158 = vsub.f32 %v1126, %v1142
        %v1159 = vsub.f32 %v1127, %v1143
        %v1160 = vsub.f32 %v1128, %v1144
        %v1165 = vcombine.high %v387, %v387
        %v1167 = vunpack.c.l.s4 1983009808
        %v1168 = vunpack.c.0.s8 %v1167
        %v1169 = vlaneseq
        %v1170 = vshrl.u32 %v1169, 7
        %v1171 = vsub.s32 %v1168, %v1170
        %v1172 = vrot.slane %v387, %v1171
        %v1174 = vunpack.c.l.s4 1983009808
        %v1175 = vunpack.c.0.s8 %v1174
        %v1176 = vlaneseq
        %v1177 = vshrl.u32 %v1176, 7
        %v1178 = vsub.s32 %v1175, %v1177
        %v1179 = vrot.slane %v1165, %v1178
        %v1180 = vcombine.high %v1172, %v1172
        %v1181 = vcombine.high %v1179, %v1179
        %v1182 = vcombine.high %v388, %v388
        %v1184 = vunpack.c.l.s4 1983009808
        %v1185 = vunpack.c.0.s8 %v1184
        %v1186 = vlaneseq
        %v1187 = vshrl.u32 %v1186, 7
        %v1188 = vsub.s32 %v1185, %v1187
        %v1189 = vrot.slane %v388, %v1188
        %v1191 = vunpack.c.l.s4 1983009808
        %v1192 = vunpack.c.0.s8 %v1191
        %v1193 = vlaneseq
        %v1194 = vshrl.u32 %v1193, 7
        %v1195 = vsub.s32 %v1192, %v1194
        %v1196 = vrot.slane %v1182, %v1195
        %v1197 = vcombine.high %v1189, %v1189
        %v1198 = vcombine.high %v1196, %v1196
        %v1199 = vcombine.high %v389, %v389
        %v1201 = vunpack.c.l.s4 1983009808
        %v1202 = vunpack.c.0.s8 %v1201
        %v1203 = vlaneseq
        %v1204 = vshrl.u32 %v1203, 7
        %v1205 = vsub.s32 %v1202, %v1204
        %v1206 = vrot.slane %v389, %v1205
        %v1208 = vunpack.c.l.s4 1983009808
        %v1209 = vunpack.c.0.s8 %v1208
        %v1210 = vlaneseq
        %v1211 = vshrl.u32 %v1210, 7
        %v1212 = vsub.s32 %v1209, %v1211
        %v1213 = vrot.slane %v1199, %v1212
        %v1214 = vcombine.high %v1206, %v1206
        %v1215 = vcombine.high %v1213, %v1213
        %v1216 = vcombine.high %v390, %v390
        %v1218 = vunpack.c.l.s4 1983009808
        %v1219 = vunpack.c.0.s8 %v1218
        %v1220 = vlaneseq
        %v1221 = vshrl.u32 %v1220, 7
        %v1222 = vsub.s32 %v1219, %v1221
        %v1223 = vrot.slane %v390, %v1222
        %v1225 = vunpack.c.l.s4 1983009808
        %v1226 = vunpack.c.0.s8 %v1225
        %v1227 = vlaneseq
        %v1228 = vshrl.u32 %v1227, 7
        %v1229 = vsub.s32 %v1226, %v1228
        %v1230 = vrot.slane %v1216, %v1229
        %v1231 = vcombine.high %v1223, %v1223
        %v1232 = vcombine.high %v1230, %v1230
        %vm1233 = vcmask 31744
        %v1235 = vsel %vm1233, %v354, 0
        %vm1237 = vcmask 1041408
        %v1239 = vsel %vm1237, %v1172, 0
        %v1242 = vsel %vm1237, %v1180, 0
        %v1245 = vsel %vm1237, %v1179, 0
        %v1248 = vsel %vm1237, %v1181, 0
        %v1251 = vsel %vm1237, %v1189, 0
        %v1254 = vsel %vm1237, %v1197, 0
        %v1257 = vsel %vm1237, %v1196, 0
        %v1260 = vsel %vm1237, %v1198, 0
        %v1263 = vsel %vm1237, %v1206, 0
        %v1266 = vsel %vm1237, %v1214, 0
        %v1269 = vsel %vm1237, %v1213, 0
        %v1272 = vsel %vm1237, %v1215, 0
        %v1275 = vsel %vm1237, %v1223, 0
        %v1278 = vsel %vm1237, %v1231, 0
        %v1281 = vsel %vm1237, %v1230, 0
        %v1284 = vsel %vm1237, %v1232, 0
        %1286 = vmatprep.subr.bf16.mxu0 %v1242
        %1287 = vmatpush1.bf16.msra.mxu0 %v1239
        %1288 = vmatprep.subr.bf16.mxu0 0
        %1289 = vmatpush1.bf16.msra.mxu0 0
        %1290 = vmatprep.subr.bf16.mxu0 0
        %1291 = vmatpush1.bf16.msra.mxu0 0
        %1292 = vmatprep.subr.bf16.mxu0 0
        %1293 = vmatpush1.bf16.msra.mxu0 0
        %1294 = vmatprep.subr.bf16.mxu0 0
        %1295 = vmatpush1.bf16.msra.mxu0 0
        %1296 = vmatprep.subr.bf16.mxu0 0
        %1297 = vmatpush1.bf16.msra.mxu0 0
        %1298 = vmatprep.subr.bf16.mxu0 0
        %1299 = vmatpush1.bf16.msra.mxu0 0
        %1300 = vmatprep.subr.bf16.mxu0 0
        %1301 = vmatpush1.bf16.msra.mxu0 0
        %1302 = vmatprep.subr.bf16.mxu0 0
        %1303 = vmatpush1.bf16.msra.mxu0 0
        %1304 = vmatprep.subr.bf16.mxu0 0
        %1305 = vmatpush1.bf16.msra.mxu0 0
        %1306 = vmatprep.subr.bf16.mxu0 0
        %1307 = vmatpush1.bf16.msra.mxu0 0
        %1308 = vmatprep.subr.bf16.mxu0 0
        %1309 = vmatpush1.bf16.msra.mxu0 0
        %1310 = vmatprep.subr.bf16.mxu0 0
        %1311 = vmatpush1.bf16.msra.mxu0 0
        %1312 = vmatprep.subr.bf16.mxu0 0
        %1313 = vmatpush1.bf16.msra.mxu0 0
        %1314 = vmatprep.subr.bf16.mxu0 0
        %1315 = vmatpush1.bf16.msra.mxu0 0
        %1316 = vmatprep.subr.bf16.mxu0 0
        %1317 = vmatpush1.bf16.msra.mxu0 0
        %1318 = vmatprep.mubr.bf16.mxu0 0
        %1319 = vmatmul.mubr.bf16.gmra.mrb[0].mxu0 %v1235
        %v1320 = vpop.f32.mrb[0].mxu0
        %v1321 = vadd.f32 0.0, %v1320
        %v1322 = vpop.f32.mrb[0].mxu0
        %v1323 = vadd.f32 0.0, %v1322
        %v1324 = vpop.f32.mrb[0].mxu0
        %v1325 = vpop.f32.mrb[0].mxu0
        %1326 = vdwg.mxu0
        %1327 = vmatprep.subr.bf16.mxu0 %v1248
        %1328 = vmatpush1.bf16.msra.mxu0 %v1245
        %1329 = vmatprep.subr.bf16.mxu0 0
        %1330 = vmatpush1.bf16.msra.mxu0 0
        %1331 = vmatprep.subr.bf16.mxu0 0
        %1332 = vmatpush1.bf16.msra.mxu0 0
        %1333 = vmatprep.subr.bf16.mxu0 0
        %1334 = vmatpush1.bf16.msra.mxu0 0
        %1335 = vmatprep.subr.bf16.mxu0 0
        %1336 = vmatpush1.bf16.msra.mxu0 0
        %1337 = vmatprep.subr.bf16.mxu0 0
        %1338 = vmatpush1.bf16.msra.mxu0 0
        %1339 = vmatprep.subr.bf16.mxu0 0
        %1340 = vmatpush1.bf16.msra.mxu0 0
        %1341 = vmatprep.subr.bf16.mxu0 0
        %1342 = vmatpush1.bf16.msra.mxu0 0
        %1343 = vmatprep.subr.bf16.mxu0 0
        %1344 = vmatpush1.bf16.msra.mxu0 0
        %1345 = vmatprep.subr.bf16.mxu0 0
        %1346 = vmatpush1.bf16.msra.mxu0 0
        %1347 = vmatprep.subr.bf16.mxu0 0
        %1348 = vmatpush1.bf16.msra.mxu0 0
        %1349 = vmatprep.subr.bf16.mxu0 0
        %1350 = vmatpush1.bf16.msra.mxu0 0
        %1351 = vmatprep.subr.bf16.mxu0 0
        %1352 = vmatpush1.bf16.msra.mxu0 0
        %1353 = vmatprep.subr.bf16.mxu0 0
        %1354 = vmatpush1.bf16.msra.mxu0 0
        %1355 = vmatprep.subr.bf16.mxu0 0
        %1356 = vmatpush1.bf16.msra.mxu0 0
        %1357 = vmatprep.subr.bf16.mxu0 0
        %1358 = vmatpush1.bf16.msra.mxu0 0
        %1359 = vmatprep.mubr.bf16.mxu0 0
        %1360 = vmatmul.mubr.bf16.gmra.mrb[0].mxu0 %v1235
        %v1361 = vpop.f32.mrb[0].mxu0
        %v1362 = vadd.f32 0.0, %v1361
        %v1363 = vpop.f32.mrb[0].mxu0
        %v1364 = vadd.f32 0.0, %v1363
        %v1365 = vpop.f32.mrb[0].mxu0
        %v1366 = vpop.f32.mrb[0].mxu0
        %1367 = vdwg.mxu0
        %1368 = vmatprep.subr.bf16.mxu0 %v1254
        %1369 = vmatpush1.bf16.msra.mxu0 %v1251
        %1370 = vmatprep.subr.bf16.mxu0 0
        %1371 = vmatpush1.bf16.msra.mxu0 0
        %1372 = vmatprep.subr.bf16.mxu0 0
        %1373 = vmatpush1.bf16.msra.mxu0 0
        %1374 = vmatprep.subr.bf16.mxu0 0
        %1375 = vmatpush1.bf16.msra.mxu0 0
        %1376 = vmatprep.subr.bf16.mxu0 0
        %1377 = vmatpush1.bf16.msra.mxu0 0
        %1378 = vmatprep.subr.bf16.mxu0 0
        %1379 = vmatpush1.bf16.msra.mxu0 0
        %1380 = vmatprep.subr.bf16.mxu0 0
        %1381 = vmatpush1.bf16.msra.mxu0 0
        %1382 = vmatprep.subr.bf16.mxu0 0
        %1383 = vmatpush1.bf16.msra.mxu0 0
        %1384 = vmatprep.subr.bf16.mxu0 0
        %1385 = vmatpush1.bf16.msra.mxu0 0
        %1386 = vmatprep.subr.bf16.mxu0 0
        %1387 = vmatpush1.bf16.msra.mxu0 0
        %1388 = vmatprep.subr.bf16.mxu0 0
        %1389 = vmatpush1.bf16.msra.mxu0 0
        %1390 = vmatprep.subr.bf16.mxu0 0
        %1391 = vmatpush1.bf16.msra.mxu0 0
        %1392 = vmatprep.subr.bf16.mxu0 0
        %1393 = vmatpush1.bf16.msra.mxu0 0
        %1394 = vmatprep.subr.bf16.mxu0 0
        %1395 = vmatpush1.bf16.msra.mxu0 0
        %1396 = vmatprep.subr.bf16.mxu0 0
        %1397 = vmatpush1.bf16.msra.mxu0 0
        %1398 = vmatprep.subr.bf16.mxu0 0
        %1399 = vmatpush1.bf16.msra.mxu0 0
        %1400 = vmatprep.mubr.bf16.mxu0 0
        %1401 = vmatmul.mubr.bf16.gmra.mrb[0].mxu0 %v1235
        %v1402 = vpop.f32.mrb[0].mxu0
        %v1403 = vadd.f32 0.0, %v1402
        %v1404 = vpop.f32.mrb[0].mxu0
        %v1405 = vadd.f32 0.0, %v1404
        %v1406 = vpop.f32.mrb[0].mxu0
        %v1407 = vpop.f32.mrb[0].mxu0
        %1408 = vdwg.mxu0
        %1409 = vmatprep.subr.bf16.mxu0 %v1260
        %1410 = vmatpush1.bf16.msra.mxu0 %v1257
        %1411 = vmatprep.subr.bf16.mxu0 0
        %1412 = vmatpush1.bf16.msra.mxu0 0
        %1413 = vmatprep.subr.bf16.mxu0 0
        %1414 = vmatpush1.bf16.msra.mxu0 0
        %1415 = vmatprep.subr.bf16.mxu0 0
        %1416 = vmatpush1.bf16.msra.mxu0 0
        %1417 = vmatprep.subr.bf16.mxu0 0
        %1418 = vmatpush1.bf16.msra.mxu0 0
        %1419 = vmatprep.subr.bf16.mxu0 0
        %1420 = vmatpush1.bf16.msra.mxu0 0
        %1421 = vmatprep.subr.bf16.mxu0 0
        %1422 = vmatpush1.bf16.msra.mxu0 0
        %1423 = vmatprep.subr.bf16.mxu0 0
        %1424 = vmatpush1.bf16.msra.mxu0 0
        %1425 = vmatprep.subr.bf16.mxu0 0
        %1426 = vmatpush1.bf16.msra.mxu0 0
        %1427 = vmatprep.subr.bf16.mxu0 0
        %1428 = vmatpush1.bf16.msra.mxu0 0
        %1429 = vmatprep.subr.bf16.mxu0 0
        %1430 = vmatpush1.bf16.msra.mxu0 0
        %1431 = vmatprep.subr.bf16.mxu0 0
        %1432 = vmatpush1.bf16.msra.mxu0 0
        %1433 = vmatprep.subr.bf16.mxu0 0
        %1434 = vmatpush1.bf16.msra.mxu0 0
        %1435 = vmatprep.subr.bf16.mxu0 0
        %1436 = vmatpush1.bf16.msra.mxu0 0
        %1437 = vmatprep.subr.bf16.mxu0 0
        %1438 = vmatpush1.bf16.msra.mxu0 0
        %1439 = vmatprep.subr.bf16.mxu0 0
        %1440 = vmatpush1.bf16.msra.mxu0 0
        %1441 = vmatprep.mubr.bf16.mxu0 0
        %1442 = vmatmul.mubr.bf16.gmra.mrb[0].mxu0 %v1235
        %v1443 = vpop.f32.mrb[0].mxu0
        %v1444 = vadd.f32 0.0, %v1443
        %v1445 = vpop.f32.mrb[0].mxu0
        %v1446 = vadd.f32 0.0, %v1445
        %v1447 = vpop.f32.mrb[0].mxu0
        %v1448 = vpop.f32.mrb[0].mxu0
        %1449 = vdwg.mxu0
        %1450 = vmatprep.subr.bf16.mxu0 %v1266
        %1451 = vmatpush1.bf16.msra.mxu0 %v1263
        %1452 = vmatprep.subr.bf16.mxu0 0
        %1453 = vmatpush1.bf16.msra.mxu0 0
        %1454 = vmatprep.subr.bf16.mxu0 0
        %1455 = vmatpush1.bf16.msra.mxu0 0
        %1456 = vmatprep.subr.bf16.mxu0 0
        %1457 = vmatpush1.bf16.msra.mxu0 0
        %1458 = vmatprep.subr.bf16.mxu0 0
        %1459 = vmatpush1.bf16.msra.mxu0 0
        %1460 = vmatprep.subr.bf16.mxu0 0
        %1461 = vmatpush1.bf16.msra.mxu0 0
        %1462 = vmatprep.subr.bf16.mxu0 0
        %1463 = vmatpush1.bf16.msra.mxu0 0
        %1464 = vmatprep.subr.bf16.mxu0 0
        %1465 = vmatpush1.bf16.msra.mxu0 0
        %1466 = vmatprep.subr.bf16.mxu0 0
        %1467 = vmatpush1.bf16.msra.mxu0 0
        %1468 = vmatprep.subr.bf16.mxu0 0
        %1469 = vmatpush1.bf16.msra.mxu0 0
        %1470 = vmatprep.subr.bf16.mxu0 0
        %1471 = vmatpush1.bf16.msra.mxu0 0
        %1472 = vmatprep.subr.bf16.mxu0 0
        %1473 = vmatpush1.bf16.msra.mxu0 0
        %1474 = vmatprep.subr.bf16.mxu0 0
        %1475 = vmatpush1.bf16.msra.mxu0 0
        %1476 = vmatprep.subr.bf16.mxu0 0
        %1477 = vmatpush1.bf16.msra.mxu0 0
        %1478 = vmatprep.subr.bf16.mxu0 0
        %1479 = vmatpush1.bf16.msra.mxu0 0
        %1480 = vmatprep.subr.bf16.mxu0 0
        %1481 = vmatpush1.bf16.msra.mxu0 0
        %1482 = vmatprep.mubr.bf16.mxu0 0
        %1483 = vmatmul.mubr.bf16.gmra.mrb[0].mxu0 %v1235
        %v1484 = vpop.f32.mrb[0].mxu0
        %v1485 = vadd.f32 0.0, %v1484
        %v1486 = vpop.f32.mrb[0].mxu0
        %v1487 = vadd.f32 0.0, %v1486
        %v1488 = vpop.f32.mrb[0].mxu0
        %v1489 = vpop.f32.mrb[0].mxu0
        %1490 = vdwg.mxu0
        %1491 = vmatprep.subr.bf16.mxu0 %v1272
        %1492 = vmatpush1.bf16.msra.mxu0 %v1269
        %1493 = vmatprep.subr.bf16.mxu0 0
        %1494 = vmatpush1.bf16.msra.mxu0 0
        %1495 = vmatprep.subr.bf16.mxu0 0
        %1496 = vmatpush1.bf16.msra.mxu0 0
        %1497 = vmatprep.subr.bf16.mxu0 0
        %1498 = vmatpush1.bf16.msra.mxu0 0
        %1499 = vmatprep.subr.bf16.mxu0 0
        %1500 = vmatpush1.bf16.msra.mxu0 0
        %1501 = vmatprep.subr.bf16.mxu0 0
        %1502 = vmatpush1.bf16.msra.mxu0 0
        %1503 = vmatprep.subr.bf16.mxu0 0
        %1504 = vmatpush1.bf16.msra.mxu0 0
        %1505 = vmatprep.subr.bf16.mxu0 0
        %1506 = vmatpush1.bf16.msra.mxu0 0
        %1507 = vmatprep.subr.bf16.mxu0 0
        %1508 = vmatpush1.bf16.msra.mxu0 0
        %1509 = vmatprep.subr.bf16.mxu0 0
        %1510 = vmatpush1.bf16.msra.mxu0 0
        %1511 = vmatprep.subr.bf16.mxu0 0
        %1512 = vmatpush1.bf16.msra.mxu0 0
        %1513 = vmatprep.subr.bf16.mxu0 0
        %1514 = vmatpush1.bf16.msra.mxu0 0
        %1515 = vmatprep.subr.bf16.mxu0 0
        %1516 = vmatpush1.bf16.msra.mxu0 0
        %1517 = vmatprep.subr.bf16.mxu0 0
        %1518 = vmatpush1.bf16.msra.mxu0 0
        %1519 = vmatprep.subr.bf16.mxu0 0
        %1520 = vmatpush1.bf16.msra.mxu0 0
        %1521 = vmatprep.subr.bf16.mxu0 0
        %1522 = vmatpush1.bf16.msra.mxu0 0
        %1523 = vmatprep.mubr.bf16.mxu0 0
        %1524 = vmatmul.mubr.bf16.gmra.mrb[0].mxu0 %v1235
        %v1525 = vpop.f32.mrb[0].mxu0
        %v1526 = vadd.f32 0.0, %v1525
        %v1527 = vpop.f32.mrb[0].mxu0
        %v1528 = vadd.f32 0.0, %v1527
        %v1529 = vpop.f32.mrb[0].mxu0
        %v1530 = vpop.f32.mrb[0].mxu0
        %1531 = vdwg.mxu0
        %1532 = vmatprep.subr.bf16.mxu0 %v1278
        %1533 = vmatpush1.bf16.msra.mxu0 %v1275
        %1534 = vmatprep.subr.bf16.mxu0 0
        %1535 = vmatpush1.bf16.msra.mxu0 0
        %1536 = vmatprep.subr.bf16.mxu0 0
        %1537 = vmatpush1.bf16.msra.mxu0 0
        %1538 = vmatprep.subr.bf16.mxu0 0
        %1539 = vmatpush1.bf16.msra.mxu0 0
        %1540 = vmatprep.subr.bf16.mxu0 0
        %1541 = vmatpush1.bf16.msra.mxu0 0
        %1542 = vmatprep.subr.bf16.mxu0 0
        %1543 = vmatpush1.bf16.msra.mxu0 0
        %1544 = vmatprep.subr.bf16.mxu0 0
        %1545 = vmatpush1.bf16.msra.mxu0 0
        %1546 = vmatprep.subr.bf16.mxu0 0
        %1547 = vmatpush1.bf16.msra.mxu0 0
        %1548 = vmatprep.subr.bf16.mxu0 0
        %1549 = vmatpush1.bf16.msra.mxu0 0
        %1550 = vmatprep.subr.bf16.mxu0 0
        %1551 = vmatpush1.bf16.msra.mxu0 0
        %1552 = vmatprep.subr.bf16.mxu0 0
        %1553 = vmatpush1.bf16.msra.mxu0 0
        %1554 = vmatprep.subr.bf16.mxu0 0
        %1555 = vmatpush1.bf16.msra.mxu0 0
        %1556 = vmatprep.subr.bf16.mxu0 0
        %1557 = vmatpush1.bf16.msra.mxu0 0
        %1558 = vmatprep.subr.bf16.mxu0 0
        %1559 = vmatpush1.bf16.msra.mxu0 0
        %1560 = vmatprep.subr.bf16.mxu0 0
        %1561 = vmatpush1.bf16.msra.mxu0 0
        %1562 = vmatprep.subr.bf16.mxu0 0
        %1563 = vmatpush1.bf16.msra.mxu0 0
        %1564 = vmatprep.mubr.bf16.mxu0 0
        %1565 = vmatmul.mubr.bf16.gmra.mrb[0].mxu0 %v1235
        %v1566 = vpop.f32.mrb[0].mxu0
        %v1567 = vadd.f32 0.0, %v1566
        %v1568 = vpop.f32.mrb[0].mxu0
        %v1569 = vadd.f32 0.0, %v1568
        %v1570 = vpop.f32.mrb[0].mxu0
        %v1571 = vpop.f32.mrb[0].mxu0
        %1572 = vdwg.mxu0
        %1573 = vmatprep.subr.bf16.mxu0 %v1284
        %1574 = vmatpush1.bf16.msra.mxu0 %v1281
        %1575 = vmatprep.subr.bf16.mxu0 0
        %1576 = vmatpush1.bf16.msra.mxu0 0
        %1577 = vmatprep.subr.bf16.mxu0 0
        %1578 = vmatpush1.bf16.msra.mxu0 0
        %1579 = vmatprep.subr.bf16.mxu0 0
        %1580 = vmatpush1.bf16.msra.mxu0 0
        %1581 = vmatprep.subr.bf16.mxu0 0
        %1582 = vmatpush1.bf16.msra.mxu0 0
        %1583 = vmatprep.subr.bf16.mxu0 0
        %1584 = vmatpush1.bf16.msra.mxu0 0
        %1585 = vmatprep.subr.bf16.mxu0 0
        %1586 = vmatpush1.bf16.msra.mxu0 0
        %1587 = vmatprep.subr.bf16.mxu0 0
        %1588 = vmatpush1.bf16.msra.mxu0 0
        %1589 = vmatprep.subr.bf16.mxu0 0
        %1590 = vmatpush1.bf16.msra.mxu0 0
        %1591 = vmatprep.subr.bf16.mxu0 0
        %1592 = vmatpush1.bf16.msra.mxu0 0
        %1593 = vmatprep.subr.bf16.mxu0 0
        %1594 = vmatpush1.bf16.msra.mxu0 0
        %1595 = vmatprep.subr.bf16.mxu0 0
        %1596 = vmatpush1.bf16.msra.mxu0 0
        %1597 = vmatprep.subr.bf16.mxu0 0
        %1598 = vmatpush1.bf16.msra.mxu0 0
        %1599 = vmatprep.subr.bf16.mxu0 0
        %1600 = vmatpush1.bf16.msra.mxu0 0
        %1601 = vmatprep.subr.bf16.mxu0 0
        %1602 = vmatpush1.bf16.msra.mxu0 0
        %1603 = vmatprep.subr.bf16.mxu0 0
        %1604 = vmatpush1.bf16.msra.mxu0 0
        %1605 = vmatprep.mubr.bf16.mxu0 0
        %1606 = vmatmul.mubr.bf16.gmra.mrb[0].mxu0 %v1235
        %v1607 = vpop.f32.mrb[0].mxu0
        %v1608 = vadd.f32 0.0, %v1607
        %v1609 = vpop.f32.mrb[0].mxu0
        %v1610 = vadd.f32 0.0, %v1609
        %v1611 = vpop.f32.mrb[0].mxu0
        %v1612 = vpop.f32.mrb[0].mxu0
        %1613 = vdwg.mxu0
        %vm1614 = vcmp.lt.f32.partialorder %v1321, 0.5
        %vm1615 = vcmp.lt.f32.partialorder %v1323, 0.5
        %vm1616 = vcmp.lt.f32.partialorder %v1362, 0.5
        %vm1617 = vcmp.lt.f32.partialorder %v1364, 0.5
        %vm1618 = vcmp.lt.f32.partialorder %v1403, 0.5
        %vm1619 = vcmp.lt.f32.partialorder %v1405, 0.5
        %vm1620 = vcmp.lt.f32.partialorder %v1444, 0.5
        %vm1621 = vcmp.lt.f32.partialorder %v1446, 0.5
        %vm1622 = vcmp.lt.f32.partialorder %v1485, 0.5
        %vm1623 = vcmp.lt.f32.partialorder %v1487, 0.5
        %vm1624 = vcmp.lt.f32.partialorder %v1526, 0.5
        %vm1625 = vcmp.lt.f32.partialorder %v1528, 0.5
        %vm1626 = vcmp.lt.f32.partialorder %v1567, 0.5
        %vm1627 = vcmp.lt.f32.partialorder %v1569, 0.5
        %vm1628 = vcmp.lt.f32.partialorder %v1608, 0.5
        %vm1629 = vcmp.lt.f32.partialorder %v1610, 0.5
        %v1630 = vsel %vm1614, 1, 0
        %v1631 = vsel %vm1615, 1, 0
        %v1632 = vsel %vm1616, 1, 0
        %v1633 = vsel %vm1617, 1, 0
        %v1634 = vsel %vm1618, 1, 0
        %v1635 = vsel %vm1619, 1, 0
        %v1636 = vsel %vm1620, 1, 0
        %v1637 = vsel %vm1621, 1, 0
        %v1638 = vsel %vm1622, 1, 0
        %v1639 = vsel %vm1623, 1, 0
        %v1640 = vsel %vm1624, 1, 0
        %v1641 = vsel %vm1625, 1, 0
        %v1642 = vsel %vm1626, 1, 0
        %v1643 = vsel %vm1627, 1, 0
        %v1644 = vsel %vm1628, 1, 0
        %v1645 = vsel %vm1629, 1, 0
        %v1646 = vcvt.s32.f32 %v1630
        %v1647 = vcvt.s32.f32 %v1631
        %v1648 = vcvt.s32.f32 %v1632
        %v1649 = vcvt.s32.f32 %v1633
        %v1650 = vcvt.s32.f32 %v1634
        %v1651 = vcvt.s32.f32 %v1635
        %v1652 = vcvt.s32.f32 %v1636
        %v1653 = vcvt.s32.f32 %v1637
        %v1654 = vcvt.s32.f32 %v1638
        %v1655 = vcvt.s32.f32 %v1639
        %v1656 = vcvt.s32.f32 %v1640
        %v1657 = vcvt.s32.f32 %v1641
        %v1658 = vcvt.s32.f32 %v1642
        %v1659 = vcvt.s32.f32 %v1643
        %v1660 = vcvt.s32.f32 %v1644
        %v1661 = vcvt.s32.f32 %v1645
        %v1662 = vsub.f32 1.0, %v1646
        %v1663 = vsub.f32 1.0, %v1647
        %v1664 = vsub.f32 1.0, %v1648
        %v1665 = vsub.f32 1.0, %v1649
        %v1666 = vsub.f32 1.0, %v1650
        %v1667 = vsub.f32 1.0, %v1651
        %v1668 = vsub.f32 1.0, %v1652
        %v1669 = vsub.f32 1.0, %v1653
        %v1670 = vsub.f32 1.0, %v1654
        %v1671 = vsub.f32 1.0, %v1655
        %v1672 = vsub.f32 1.0, %v1656
        %v1673 = vsub.f32 1.0, %v1657
        %v1674 = vsub.f32 1.0, %v1658
        %v1675 = vsub.f32 1.0, %v1659
        %v1676 = vsub.f32 1.0, %v1660
        %v1677 = vsub.f32 1.0, %v1661
        %v1678 = vmul.f32 %v1662, 0.5
        %v1679 = vmul.f32 %v1663, 0.5
        %v1680 = vmul.f32 %v1664, 0.5
        %v1681 = vmul.f32 %v1665, 0.5
        %v1682 = vmul.f32 %v1666, 0.5
        %v1683 = vmul.f32 %v1667, 0.5
        %v1684 = vmul.f32 %v1668, 0.5
        %v1685 = vmul.f32 %v1669, 0.5
        %v1686 = vmul.f32 %v1670, 0.5
        %v1687 = vmul.f32 %v1671, 0.5
        %v1688 = vmul.f32 %v1672, 0.5
        %v1689 = vmul.f32 %v1673, 0.5
        %v1690 = vmul.f32 %v1674, 0.5
        %v1691 = vmul.f32 %v1675, 0.5
        %v1692 = vmul.f32 %v1676, 0.5
        %v1693 = vmul.f32 %v1677, 0.5
        %v1694 = vmul.f32 %v1678, %v1145
        %v1695 = vmul.f32 %v1679, %v1146
        %v1696 = vmul.f32 %v1680, %v1147
        %v1697 = vmul.f32 %v1681, %v1148
        %v1698 = vmul.f32 %v1682, %v1149
        %v1699 = vmul.f32 %v1683, %v1150
        %v1700 = vmul.f32 %v1684, %v1151
        %v1701 = vmul.f32 %v1685, %v1152
        %v1702 = vmul.f32 %v1686, %v1153
        %v1703 = vmul.f32 %v1687, %v1154
        %v1704 = vmul.f32 %v1688, %v1155
        %v1705 = vmul.f32 %v1689, %v1156
        %v1706 = vmul.f32 %v1690, %v1157
        %v1707 = vmul.f32 %v1691, %v1158
        %v1708 = vmul.f32 %v1692, %v1159
        %v1709 = vmul.f32 %v1693, %v1160
        %v1710 = vmul.f32 %v1646, 0.5
        %v1711 = vmul.f32 %v1647, 0.5
        %v1712 = vmul.f32 %v1648, 0.5
        %v1713 = vmul.f32 %v1649, 0.5
        %v1714 = vmul.f32 %v1650, 0.5
        %v1715 = vmul.f32 %v1651, 0.5
        %v1716 = vmul.f32 %v1652, 0.5
        %v1717 = vmul.f32 %v1653, 0.5
        %v1718 = vmul.f32 %v1654, 0.5
        %v1719 = vmul.f32 %v1655, 0.5
        %v1720 = vmul.f32 %v1656, 0.5
        %v1721 = vmul.f32 %v1657, 0.5
        %v1722 = vmul.f32 %v1658, 0.5
        %v1723 = vmul.f32 %v1659, 0.5
        %v1724 = vmul.f32 %v1660, 0.5
        %v1725 = vmul.f32 %v1661, 0.5
        %v1726 = vsub.f32 32.0, %v1145
        %v1727 = vsub.f32 32.0, %v1146
        %v1728 = vsub.f32 32.0, %v1147
        %v1729 = vsub.f32 32.0, %v1148
        %v1730 = vsub.f32 32.0, %v1149
        %v1731 = vsub.f32 32.0, %v1150
        %v1732 = vsub.f32 32.0, %v1151
        %v1733 = vsub.f32 32.0, %v1152
        %v1734 = vsub.f32 32.0, %v1153
        %v1735 = vsub.f32 32.0, %v1154
        %v1736 = vsub.f32 32.0, %v1155
        %v1737 = vsub.f32 32.0, %v1156
        %v1738 = vsub.f32 32.0, %v1157
        %v1739 = vsub.f32 32.0, %v1158
        %v1740 = vsub.f32 32.0, %v1159
        %v1741 = vsub.f32 32.0, %v1160
        %v1742 = vmax.f32 %v1726, 0.0
        %v1743 = vmax.f32 %v1727, 0.0
        %v1744 = vmax.f32 %v1728, 0.0
        %v1745 = vmax.f32 %v1729, 0.0
        %v1746 = vmax.f32 %v1730, 0.0
        %v1747 = vmax.f32 %v1731, 0.0
        %v1748 = vmax.f32 %v1732, 0.0
        %v1749 = vmax.f32 %v1733, 0.0
        %v1750 = vmax.f32 %v1734, 0.0
        %v1751 = vmax.f32 %v1735, 0.0
        %v1752 = vmax.f32 %v1736, 0.0
        %v1753 = vmax.f32 %v1737, 0.0
        %v1754 = vmax.f32 %v1738, 0.0
        %v1755 = vmax.f32 %v1739, 0.0
        %v1756 = vmax.f32 %v1740, 0.0
        %v1757 = vmax.f32 %v1741, 0.0
        %v1758 = vmul.f32 %v1710, %v1742
        %v1759 = vmul.f32 %v1711, %v1743
        %v1760 = vmul.f32 %v1712, %v1744
        %v1761 = vmul.f32 %v1713, %v1745
        %v1762 = vmul.f32 %v1714, %v1746
        %v1763 = vmul.f32 %v1715, %v1747
        %v1764 = vmul.f32 %v1716, %v1748
        %v1765 = vmul.f32 %v1717, %v1749
        %v1766 = vmul.f32 %v1718, %v1750
        %v1767 = vmul.f32 %v1719, %v1751
        %v1768 = vmul.f32 %v1720, %v1752
        %v1769 = vmul.f32 %v1721, %v1753
        %v1770 = vmul.f32 %v1722, %v1754
        %v1771 = vmul.f32 %v1723, %v1755
        %v1772 = vmul.f32 %v1724, %v1756
        %v1773 = vmul.f32 %v1725, %v1757
        %v1774 = vadd.f32 %v1694, %v1758
        %v1775 = vadd.f32 %v1695, %v1759
        %v1776 = vadd.f32 %v1696, %v1760
        %v1777 = vadd.f32 %v1697, %v1761
        %v1778 = vadd.f32 %v1698, %v1762
        %v1779 = vadd.f32 %v1699, %v1763
        %v1780 = vadd.f32 %v1700, %v1764
        %v1781 = vadd.f32 %v1701, %v1765
        %v1782 = vadd.f32 %v1702, %v1766
        %v1783 = vadd.f32 %v1703, %v1767
        %v1784 = vadd.f32 %v1704, %v1768
        %v1785 = vadd.f32 %v1705, %v1769
        %v1786 = vadd.f32 %v1706, %v1770
        %v1787 = vadd.f32 %v1707, %v1771
        %v1788 = vadd.f32 %v1708, %v1772
        %v1789 = vadd.f32 %v1709, %v1773
        %v1790 = vld [vmem:[#allocation2] sm:$0xff]
        %v1791 = vld [vmem:[#allocation2 + $0x8] sm:$0xff]
        %v1792 = vld [vmem:[#allocation2 + $0x10] sm:$0xff]
        %v1793 = vld [vmem:[#allocation2 + $0x18] sm:$0xff]
        %v1794 = vld [vmem:[#allocation2 + $0x20] sm:$0xff]
        %v1795 = vld [vmem:[#allocation2 + $0x28] sm:$0xff]
        %v1796 = vld [vmem:[#allocation2 + $0x30] sm:$0xff]
        %v1797 = vld [vmem:[#allocation2 + $0x38] sm:$0xff]
        %v1798 = vld [vmem:[#allocation2 + $0x40] sm:$0xff]
        %v1799 = vld [vmem:[#allocation2 + $0x48] sm:$0xff]
        %v1800 = vld [vmem:[#allocation2 + $0x50] sm:$0xff]
        %v1801 = vld [vmem:[#allocation2 + $0x58] sm:$0xff]
        %v1802 = vld [vmem:[#allocation2 + $0x60] sm:$0xff]
        %v1803 = vld [vmem:[#allocation2 + $0x68] sm:$0xff]
        %v1804 = vld [vmem:[#allocation2 + $0x70] sm:$0xff]
        %v1805 = vld [vmem:[#allocation2 + $0x78] sm:$0xff]
        %v1806 = vadd.f32 %v1790, %v1774
        %v1807 = vadd.f32 %v1791, %v1775
        %v1808 = vadd.f32 %v1792, %v1776
        %v1809 = vadd.f32 %v1793, %v1777
        %v1810 = vadd.f32 %v1794, %v1778
        %v1811 = vadd.f32 %v1795, %v1779
        %v1812 = vadd.f32 %v1796, %v1780
        %v1813 = vadd.f32 %v1797, %v1781
        %v1814 = vadd.f32 %v1798, %v1782
        %v1815 = vadd.f32 %v1799, %v1783
        %v1816 = vadd.f32 %v1800, %v1784
        %v1817 = vadd.f32 %v1801, %v1785
        %v1818 = vadd.f32 %v1802, %v1786
        %v1819 = vadd.f32 %v1803, %v1787
        %v1820 = vadd.f32 %v1804, %v1788
        %v1821 = vadd.f32 %v1805, %v1789
        %1822 = vst [vmem:[#allocation2] sm:$0xff] %v1806
        %1823 = vst [vmem:[#allocation2 + $0x8] sm:$0xff] %v1807
        %1824 = vst [vmem:[#allocation2 + $0x10] sm:$0xff] %v1808
        %1825 = vst [vmem:[#allocation2 + $0x18] sm:$0xff] %v1809
        %1826 = vst [vmem:[#allocation2 + $0x20] sm:$0xff] %v1810
        %1827 = vst [vmem:[#allocation2 + $0x28] sm:$0xff] %v1811
        %1828 = vst [vmem:[#allocation2 + $0x30] sm:$0xff] %v1812
        %1829 = vst [vmem:[#allocation2 + $0x38] sm:$0xff] %v1813
        %1830 = vst [vmem:[#allocation2 + $0x40] sm:$0xff] %v1814
        %1831 = vst [vmem:[#allocation2 + $0x48] sm:$0xff] %v1815
        %1832 = vst [vmem:[#allocation2 + $0x50] sm:$0xff] %v1816
        %1833 = vst [vmem:[#allocation2 + $0x58] sm:$0xff] %v1817
        %1834 = vst [vmem:[#allocation2 + $0x60] sm:$0xff] %v1818
        %1835 = vst [vmem:[#allocation2 + $0x68] sm:$0xff] %v1819
        %1836 = vst [vmem:[#allocation2 + $0x70] sm:$0xff] %v1820
        %1837 = vst [vmem:[#allocation2 + $0x78] sm:$0xff] %v1821
        // Predicated region
        $region64: #{dsh_loss.1} parent=54 // pred_check
          %p1838 = pneg %p325
        $region65: #{dsh_loss.1} parent=54 // pred_check_branch
          %1840 = sbr.rel (%p1838) target = $region67
        $region66: #{dsh_loss.1} parent=54 // pred_region
          %v1841 = vld [vmem:[#allocation2] sm:$0xff]
          %v1842 = vld [vmem:[#allocation2 + $0x8] sm:$0xff]
          %v1843 = vld [vmem:[#allocation2 + $0x10] sm:$0xff]
          %v1844 = vld [vmem:[#allocation2 + $0x18] sm:$0xff]
          %v1845 = vld [vmem:[#allocation2 + $0x20] sm:$0xff]
          %v1846 = vld [vmem:[#allocation2 + $0x28] sm:$0xff]
          %v1847 = vld [vmem:[#allocation2 + $0x30] sm:$0xff]
          %v1848 = vld [vmem:[#allocation2 + $0x38] sm:$0xff]
          %v1849 = vld [vmem:[#allocation2 + $0x40] sm:$0xff]
          %v1850 = vld [vmem:[#allocation2 + $0x48] sm:$0xff]
          %v1851 = vld [vmem:[#allocation2 + $0x50] sm:$0xff]
          %v1852 = vld [vmem:[#allocation2 + $0x58] sm:$0xff]
          %v1853 = vld [vmem:[#allocation2 + $0x60] sm:$0xff]
          %v1854 = vld [vmem:[#allocation2 + $0x68] sm:$0xff]
          %v1855 = vld [vmem:[#allocation2 + $0x70] sm:$0xff]
          %v1856 = vld [vmem:[#allocation2 + $0x78] sm:$0xff]
          %v1857 = vadd.f32 %v1841, %v1842
          %v1858 = vadd.f32 %v1857, %v1843
          %v1859 = vadd.f32 %v1858, %v1844
          %v1860 = vadd.f32 %v1859, %v1845
          %v1861 = vadd.f32 %v1860, %v1846
          %v1862 = vadd.f32 %v1861, %v1847
          %v1863 = vadd.f32 %v1862, %v1848
          %v1864 = vadd.f32 %v1863, %v1849
          %v1865 = vadd.f32 %v1864, %v1850
          %v1866 = vadd.f32 %v1865, %v1851
          %v1867 = vadd.f32 %v1866, %v1852
          %v1868 = vadd.f32 %v1867, %v1853
          %v1869 = vadd.f32 %v1868, %v1854
          %v1870 = vadd.f32 %v1869, %v1855
          %v1871 = vadd.f32 %v1870, %v1856
          %1872 = vadd.xlane.f32.xlu0 %v1871
          %v1873 = vpop.xlane.xlu0 %1872
          %v1874 = vrot.slane %v1873, 4
          %v1875 = vadd.f32 %v1873, %v1874
          %v1876 = vrot.slane %v1875, 2
          %v1877 = vadd.f32 %v1875, %v1876
          %v1878 = vrot.slane %v1877, 1
          %v1879 = vadd.f32 %v1877, %v1878
          %s1880 = vtos %v1879
          %v1881 = vstv %s1880
          %1882 = vst [vmem:[%s323] sm:$0xff] %v1881
        $region67: #{dsh_loss.1} parent=54 // pred_fallthru
          _
        %p1883 = scmp.lt.s32.totalorder %s19, 1
        %s1884 = scalar_select %p1883, %s19, 1
        %s1885 = smul.addr %s1884, 8
        %s1886 = scalar_lea.vmem %s4, %s1885
        // Predicated region
        $region68: #{dsh_loss.1} parent=54 // pred_check
          %p1887 = pneg %p143
        $region69: #{dsh_loss.1} parent=54 // pred_check_branch
          %1889 = sbr.rel (%p1887) target = $region71
        $region70: #{dsh_loss.1} parent=54 // pred_region
          _
        $region71: #{dsh_loss.1} parent=54 // pred_fallthru
          _
      $region55: #{dsh_loss.1} parent=5 // pred_fallthru
        _
      %p1890 = scmp.le.s32.totalorder 2, %s10
      // Predicated region
      $region72: #{dsh_loss.1} parent=5 // pred_check
        %p1891 = pneg %p1890
      $region73: #{dsh_loss.1} parent=5 // pred_check_branch
        %1893 = sbr.rel (%p1891) target = $region75
      $region74: #{dsh_loss.1} parent=5 // pred_region
        %s1894 = ssub.s32 %s10, 2
        // Predicated region
        $region76: #{dsh_loss.1} parent=74 // pred_check
          %p1895 = pneg %p149
        $region77: #{dsh_loss.1} parent=74 // pred_check_branch
          %1897 = sbr.rel (%p1895) target = $region79
        $region78: #{dsh_loss.1} parent=74 // pred_region
          %p1898 = scmp.lt.s32.totalorder %s21, 1
          %s1899 = scalar_select %p1898, %s21, 1
          %s1900 = smul.addr %s1899, 8
          %s1901 = scalar_lea.vmem %s4, %s1900
        $region79: #{dsh_loss.1} parent=74 // pred_fallthru
          _
      $region75: #{dsh_loss.1} parent=5 // pred_fallthru
        _
    $region6: #{dsh_loss.1} parent=1 // loop_footer
      %s14 = sadd.s32 1, %s10
    $region7: #{dsh_loss.1} parent=1 // loop_footer_branch
      %9 = sbr.rel target = $region3
    $region8: #{dsh_loss.1} parent=1 // loop_exit
      _

</llo_original>
